<compile_context>
chip_gen: v5e
topology: v5e:2x2
jax: 0.10.0
libtpu: 0.0.40
codegen_flags: <defaults>
</compile_context>

<pallas_src>
import math

import numpy as np
import jax
import jax.numpy as jnp
from jax.experimental import pallas as pl
from jax.experimental.pallas import tpu as pltpu


SEG = 32          # rows per batch segment (>= 18 data + 2*4 conv pad)
L_IN = 18         # input length implied by nn.LSTM(input_size=96) (= 32 * 3)


# --------------------------------- kernel ---------------------------------- #
def dilated_net_kernel(x_ref,
                       c1w_ref, c1b_ref, c2w_ref, c2b_ref, c3w_ref, c3b_ref,
                       p1_ref, p2_ref, p3_ref,
                       lstm_w_ref, lstm_b_ref,
                       l1w_ref, l1b_ref, l2w_ref, l2b_ref, l3w_ref, l3b_ref,
                       out_ref):
    n = x_ref.shape[0]            # bb * SEG rows in this batch block
    m = n - 8                     # conv output rows computed per slab
    bb = out_ref.shape[0]         # batch block size

    def conv_im2col(a, w_ref, b_ref):
        # a: (n, Cin).  One matmul per conv layer: (m, 8*Cin) @ (8*Cin, Cout).
        cols = jnp.concatenate([a[k:k + m, :] for k in range(8)], axis=-1)
        return (jnp.dot(cols, w_ref[...], preferred_element_type=jnp.float32)
                + b_ref[...])

    def pool2_relu_pack(y, sel_ref):
        # MaxPool1d(2): max of adjacent rows; the constant 0/1 selection
        # matmul keeps rows 2p (within each segment), downsamples by 2 and
        # re-packs into the zero-padded segment layout of the next layer.
        pair_max = jnp.maximum(y[:-1, :], y[1:, :])           # (m-1, C)
        packed = jnp.dot(sel_ref[...], pair_max,
                         preferred_element_type=jnp.float32)
        return jnp.maximum(packed, 0.0)                       # ReLU

    a0 = x_ref[...]                                                   # (n, 4)
    a1 = pool2_relu_pack(conv_im2col(a0, c1w_ref, c1b_ref), p1_ref)   # (n, 8)
    a2 = pool2_relu_pack(conv_im2col(a1, c2w_ref, c2b_ref), p2_ref)   # (n, 16)
    f3 = pool2_relu_pack(conv_im2col(a2, c3w_ref, c3b_ref), p3_ref)   # (3*bb, 32)

    # f3 rows are ordered l*bb + b, so a lane concat builds the (bb, 96)
    # feature with index l*32 + c (the wrapper reorders the LSTM weights to
    # match torch's c*3 + l flatten order).
    feat = jnp.concatenate(
        [f3[0:bb, :], f3[bb:2 * bb, :], f3[2 * bb:3 * bb, :]], axis=-1)

    # Fused bidirectional LSTM cell (seq_len == 1, zero initial state).
    gates = (jnp.dot(feat, lstm_w_ref[...], preferred_element_type=jnp.float32)
             + lstm_b_ref[...])                                   # (bb, 384)
    i_g = jax.nn.sigmoid(gates[:, 0:128])
    g_g = jnp.tanh(gates[:, 128:256])
    o_g = jax.nn.sigmoid(gates[:, 256:384])
    h = o_g * jnp.tanh(i_g * g_g)                                 # (bb, 128)

    h = jnp.maximum(
        jnp.dot(h, l1w_ref[...], preferred_element_type=jnp.float32)
        + l1b_ref[...], 0.0)                                      # (bb, 256)
    h = jnp.maximum(
        jnp.dot(h, l2w_ref[...], preferred_element_type=jnp.float32)
        + l2b_ref[...], 0.0)                                      # (bb, 32)
    out_ref[...] = (jnp.dot(h, l3w_ref[...], preferred_element_type=jnp.float32)
                    + l3b_ref[...])                               # (bb, 1)


# ------------------------------ wrapper setup ------------------------------- #
def _pool_selectors(bb):
    """Constant 0/1 matrices: downsample-by-2 + re-pack into segment layout."""
    n = bb * SEG
    m = n - 9                                   # rows of the pair-max tensor
    p1 = np.zeros((n, m), np.float32)           # pool1: 19 -> 9, offset 4
    p2 = np.zeros((n, m), np.float32)           # pool2: 10 -> 5, offset 4
    p3 = np.zeros((3 * bb, m), np.float32)      # pool3:  6 -> 3, rows l*bb+b
    for b in range(bb):
        for q in range(9):
            p1[b * SEG + 4 + q, b * SEG + 2 * q] = 1.0
        for q in range(5):
            p2[b * SEG + 4 + q, b * SEG + 2 * q] = 1.0
        for q in range(3):
            p3[q * bb + b, b * SEG + 2 * q] = 1.0
    return jnp.asarray(p1), jnp.asarray(p2), jnp.asarray(p3)


def _prep_weights(p):
    H = 64

    def conv_w(w):                      # torch (O, I, K) -> (K*I, O)
        O, I, K = w.shape
        return jnp.transpose(w, (2, 1, 0)).reshape(K * I, O)

    def lstm_dir_w(w_ih):               # (4H, 96) -> (96, 4H), rows l*32 + c
        wt = w_ih.T.reshape(32, 3, 4 * H)               # [c, l, :]
        return jnp.transpose(wt, (1, 0, 2)).reshape(96, 4 * H)

    wf, wr = lstm_dir_w(p["w_ih_f"]), lstm_dir_w(p["w_ih_r"])
    bf, br = p["b_ih_f"] + p["b_hh_f"], p["b_ih_r"] + p["b_hh_r"]
    # Fuse both directions; drop the dead forget gate (c0 == 0).  Column order
    # [i_f | i_r | g_f | g_r | o_f | o_r], 64 lanes each.
    lstm_w = jnp.concatenate(
        [wf[:, 0:H], wr[:, 0:H],
         wf[:, 2 * H:3 * H], wr[:, 2 * H:3 * H],
         wf[:, 3 * H:4 * H], wr[:, 3 * H:4 * H]], axis=1)          # (96, 384)
    lstm_b = jnp.concatenate(
        [bf[0:H], br[0:H], bf[2 * H:3 * H], br[2 * H:3 * H],
         bf[3 * H:4 * H], br[3 * H:4 * H]]).reshape(1, 384)

    return (conv_w(p["c1w"]), p["c1b"].reshape(1, -1),
            conv_w(p["c2w"]), p["c2b"].reshape(1, -1),
            conv_w(p["c3w"]), p["c3b"].reshape(1, -1),
            lstm_w, lstm_b,
            p["l1w"].T, p["l1b"].reshape(1, -1),
            p["l2w"].T, p["l2b"].reshape(1, -1),
            p["l3w"].T, p["l3b"].reshape(1, -1))


def dilated_net_forward(x_ncl, p, *, batch_block=8):
    """x_ncl: (B, 4, 18) float32 in PyTorch NCL layout.  Returns (B, 1)."""
    B, C_in, L = x_ncl.shape
    assert L == L_IN and C_in == 4, (C_in, L)

    if B <= batch_block:
        bb, g = B, 1
    else:
        bb = batch_block                         # multiple of 8 when g > 1
        assert bb % 8 == 0
        g = pl.cdiv(B, bb)
    b_pad = g * bb

    # (B, C, L) -> (B, L, C); pad batch to a whole number of blocks; embed each
    # example in a 32-row segment [4 zeros | 18 data | 10 zeros] and flatten.
    x_blc = jnp.transpose(x_ncl, (0, 2, 1)).astype(jnp.float32)
    if b_pad != B:
        x_blc = jnp.pad(x_blc, ((0, b_pad - B), (0, 0), (0, 0)))
    x_flat = jnp.pad(x_blc, ((0, 0), (4, SEG - L_IN - 4), (0, 0))).reshape(
        b_pad * SEG, C_in)

    p1, p2, p3 = _pool_selectors(bb)
    (c1w, c1b, c2w, c2b, c3w, c3b,
     lstm_w, lstm_b, l1w, l1b, l2w, l2b, l3w, l3b) = _prep_weights(p)

    consts = (c1w, c1b, c2w, c2b, c3w, c3b, p1, p2, p3,
              lstm_w, lstm_b, l1w, l1b, l2w, l2b, l3w, l3b)

    def const_spec(a):
        return pl.BlockSpec(a.shape, lambda i, _nd=a.ndim: (0,) * _nd)

    out = pl.pallas_call(
        dilated_net_kernel,
        out_shape=jax.ShapeDtypeStruct((b_pad, 1), jnp.float32),
        grid=(g,),
        in_specs=[pl.BlockSpec((bb * SEG, C_in), lambda i: (i, 0))]
                 + [const_spec(a) for a in consts],
        out_specs=pl.BlockSpec((bb, 1), lambda i: (i, 0)),
        compiler_params=pltpu.CompilerParams(
            dimension_semantics=("parallel",)),
    )(x_flat, *consts)
    return out[:B]


# ------------------------- deterministic parameters ------------------------- #
def make_params(key):
    ks = jax.random.split(key, 18)

    def u(k, shape, fan_in):
        bound = 1.0 / math.sqrt(fan_in)
        return jax.random.uniform(k, shape, jnp.float32, -bound, bound)

    H = 64
    return {
        # Conv1d weights in torch layout (out_channels, in_channels, K)
        "c1w": u(ks[0], (8, 4, 8), 4 * 8),    "c1b": u(ks[1], (8,), 4 * 8),
        "c2w": u(ks[2], (16, 8, 8), 8 * 8),   "c2b": u(ks[3], (16,), 8 * 8),
        "c3w": u(ks[4], (32, 16, 8), 16 * 8), "c3b": u(ks[5], (32,), 16 * 8),
        # LSTM (bidirectional, input 96, hidden 64).  W_hh is omitted because
        # h0 = c0 = 0 with seq_len == 1, so its contribution is exactly zero.
        "w_ih_f": u(ks[6], (4 * H, 96), H), "b_ih_f": u(ks[7], (4 * H,), H),
        "b_hh_f": u(ks[8], (4 * H,), H),
        "w_ih_r": u(ks[9], (4 * H, 96), H), "b_ih_r": u(ks[10], (4 * H,), H),
        "b_hh_r": u(ks[11], (4 * H,), H),
        # Linear layers in torch layout (out_features, in_features)
        "l1w": u(ks[12], (256, 128), 128), "l1b": u(ks[13], (256,), 128),
        "l2w": u(ks[14], (32, 256), 256),  "l2b": u(ks[15], (32,), 256),
        "l3w": u(ks[16], (1, 32), 32),     "l3b": u(ks[17], (1,), 32),
    }


# --------------------------- pure-JAX reference ----------------------------- #
def reference_forward(x, p):
    def conv(x, w, b, pad):
        y = jax.lax.conv_general_dilated(
            x, w, window_strides=(1,), padding=[(pad, pad)],
            dimension_numbers=("NCH", "OIH", "NCH"))
        return y + b[None, :, None]

    def pool_relu(x):
        B, C, L = x.shape
        P = L // 2
        y = x[:, :, :2 * P].reshape(B, C, P, 2).max(axis=-1)
        return jnp.maximum(y, 0.0)

    x = pool_relu(conv(x, p["c1w"], p["c1b"], 4))
    x = pool_relu(conv(x, p["c2w"], p["c2b"], 4))
    x = pool_relu(conv(x, p["c3w"], p["c3b"], 4))
    feat = x.reshape(x.shape[0], -1)                   # (B, 96), order c*3 + l

    def lstm_dir(w_ih, b_ih, b_hh):
        g = feat @ w_ih.T + b_ih + b_hh
        H = 64
        i = jax.nn.sigmoid(g[:, :H])
        gg = jnp.tanh(g[:, 2 * H:3 * H])
        o = jax.nn.sigmoid(g[:, 3 * H:])
        return o * jnp.tanh(i * gg)

    h = jnp.concatenate(
        [lstm_dir(p["w_ih_f"], p["b_ih_f"], p["b_hh_f"]),
         lstm_dir(p["w_ih_r"], p["b_ih_r"], p["b_hh_r"])], axis=1)
    h = jnp.maximum(h @ p["l1w"].T + p["l1b"], 0.0)
    h = jnp.maximum(h @ p["l2w"].T + p["l2b"], 0.0)
    return h @ p["l3w"].T + p["l3b"]


if __name__ == "__main__":
    key = jax.random.PRNGKey(0)
    pkey, xkey = jax.random.split(key)
    params = make_params(pkey)
    # Input length 18 -> conv/pool lengths 9 -> 5 -> 3, flattened feature 96.
    x = jax.random.normal(xkey, (2, 4, 18), jnp.float32)

    y = jax.block_until_ready(dilated_net_forward(x, params))
    y_ref = reference_forward(x, params)

    assert y.shape == (2, 1), y.shape
    if not jnp.allclose(y, y_ref, atol=1e-2, rtol=1e-2):
        raise AssertionError(f"mismatch: pallas={y} ref={y_ref}")
    print("KERNEL_OK")
</pallas_src>

<mosaic_0001>
module attributes {stable_mosaic.version = 11 : i64} {
  func.func @dilated_net_kernel(%arg0: i32, %arg1: memref<64x4xf32, #tpu.memory_space<vmem>>, %arg2: memref<32x8xf32, #tpu.memory_space<vmem>>, %arg3: memref<1x8xf32, #tpu.memory_space<vmem>>, %arg4: memref<64x16xf32, #tpu.memory_space<vmem>>, %arg5: memref<1x16xf32, #tpu.memory_space<vmem>>, %arg6: memref<128x32xf32, #tpu.memory_space<vmem>>, %arg7: memref<1x32xf32, #tpu.memory_space<vmem>>, %arg8: memref<64x55xf32, #tpu.memory_space<vmem>>, %arg9: memref<64x55xf32, #tpu.memory_space<vmem>>, %arg10: memref<6x55xf32, #tpu.memory_space<vmem>>, %arg11: memref<96x384xf32, #tpu.memory_space<vmem>>, %arg12: memref<1x384xf32, #tpu.memory_space<vmem>>, %arg13: memref<128x256xf32, #tpu.memory_space<vmem>>, %arg14: memref<1x256xf32, #tpu.memory_space<vmem>>, %arg15: memref<256x32xf32, #tpu.memory_space<vmem>>, %arg16: memref<1x32xf32, #tpu.memory_space<vmem>>, %arg17: memref<32x1xf32, #tpu.memory_space<vmem>>, %arg18: memref<1x1xf32, #tpu.memory_space<vmem>>, %arg19: memref<2x1xf32, #tpu.memory_space<vmem>>) attributes {dimension_semantics = [#tpu.dimension_semantics<parallel>], iteration_bounds = array<i64: 1>, scalar_prefetch = 0 : i64, scratch_operands = 0 : i64, tpu.core_type = #tpu.core_type<tc>, window_params = [{transform_indices = @transform_0, window_bounds = array<i64: 64, 4>}, {pipeline_mode = #tpu.pipeline_mode<synchronous>, transform_indices = @transform_1, window_bounds = array<i64: 32, 8>}, {pipeline_mode = #tpu.pipeline_mode<synchronous>, transform_indices = @transform_2, window_bounds = array<i64: 1, 8>}, {pipeline_mode = #tpu.pipeline_mode<synchronous>, transform_indices = @transform_3, window_bounds = array<i64: 64, 16>}, {pipeline_mode = #tpu.pipeline_mode<synchronous>, transform_indices = @transform_4, window_bounds = array<i64: 1, 16>}, {pipeline_mode = #tpu.pipeline_mode<synchronous>, transform_indices = @transform_5, window_bounds = array<i64: 128, 32>}, {pipeline_mode = #tpu.pipeline_mode<synchronous>, transform_indices = @transform_6, window_bounds = array<i64: 1, 32>}, {pipeline_mode = #tpu.pipeline_mode<synchronous>, transform_indices = @transform_7, window_bounds = array<i64: 64, 55>}, {pipeline_mode = #tpu.pipeline_mode<synchronous>, transform_indices = @transform_8, window_bounds = array<i64: 64, 55>}, {pipeline_mode = #tpu.pipeline_mode<synchronous>, transform_indices = @transform_9, window_bounds = array<i64: 6, 55>}, {pipeline_mode = #tpu.pipeline_mode<synchronous>, transform_indices = @transform_10, window_bounds = array<i64: 96, 384>}, {pipeline_mode = #tpu.pipeline_mode<synchronous>, transform_indices = @transform_11, window_bounds = array<i64: 1, 384>}, {pipeline_mode = #tpu.pipeline_mode<synchronous>, transform_indices = @transform_12, window_bounds = array<i64: 128, 256>}, {pipeline_mode = #tpu.pipeline_mode<synchronous>, transform_indices = @transform_13, window_bounds = array<i64: 1, 256>}, {pipeline_mode = #tpu.pipeline_mode<synchronous>, transform_indices = @transform_14, window_bounds = array<i64: 256, 32>}, {pipeline_mode = #tpu.pipeline_mode<synchronous>, transform_indices = @transform_15, window_bounds = array<i64: 1, 32>}, {pipeline_mode = #tpu.pipeline_mode<synchronous>, transform_indices = @transform_16, window_bounds = array<i64: 32, 1>}, {pipeline_mode = #tpu.pipeline_mode<synchronous>, transform_indices = @transform_17, window_bounds = array<i64: 1, 1>}, {transform_indices = @transform_18, window_bounds = array<i64: 2, 1>}]} {
    %c0 = arith.constant 0 : index
    %c0_0 = arith.constant 0 : index
    %0 = vector.load %arg1[%c0, %c0_0] : memref<64x4xf32, #tpu.memory_space<vmem>>, vector<64x4xf32>
    %1 = vector.extract_strided_slice %0 {offsets = [0, 0], sizes = [56, 4], strides = [1, 1]} : vector<64x4xf32> to vector<56x4xf32>
    %2 = vector.extract_strided_slice %0 {offsets = [1, 0], sizes = [56, 4], strides = [1, 1]} : vector<64x4xf32> to vector<56x4xf32>
    %3 = vector.extract_strided_slice %0 {offsets = [2, 0], sizes = [56, 4], strides = [1, 1]} : vector<64x4xf32> to vector<56x4xf32>
    %4 = vector.extract_strided_slice %0 {offsets = [3, 0], sizes = [56, 4], strides = [1, 1]} : vector<64x4xf32> to vector<56x4xf32>
    %5 = vector.extract_strided_slice %0 {offsets = [4, 0], sizes = [56, 4], strides = [1, 1]} : vector<64x4xf32> to vector<56x4xf32>
    %6 = vector.extract_strided_slice %0 {offsets = [5, 0], sizes = [56, 4], strides = [1, 1]} : vector<64x4xf32> to vector<56x4xf32>
    %7 = vector.extract_strided_slice %0 {offsets = [6, 0], sizes = [56, 4], strides = [1, 1]} : vector<64x4xf32> to vector<56x4xf32>
    %8 = vector.extract_strided_slice %0 {offsets = [7, 0], sizes = [56, 4], strides = [1, 1]} : vector<64x4xf32> to vector<56x4xf32>
    %9 = tpu.concatenate %1, %2, %3, %4, %5, %6, %7, %8 in 1 : vector<56x4xf32>, vector<56x4xf32>, vector<56x4xf32>, vector<56x4xf32>, vector<56x4xf32>, vector<56x4xf32>, vector<56x4xf32>, vector<56x4xf32> -> vector<56x32xf32>
    %c0_1 = arith.constant 0 : index
    %c0_2 = arith.constant 0 : index
    %10 = vector.load %arg2[%c0_1, %c0_2] : memref<32x8xf32, #tpu.memory_space<vmem>>, vector<32x8xf32>
    %cst = arith.constant dense<0.000000e+00> : vector<56x8xf32>
    %11 = tpu.matmul %9, %10, %cst {dimension_numbers = #tpu.dot_dimension_numbers<[1], [0], [0], [1], [0, 0, 1, 1], [], []>} : vector<56x32xf32>, vector<32x8xf32>, vector<56x8xf32> -> vector<56x8xf32>
    %c0_3 = arith.constant 0 : index
    %c0_4 = arith.constant 0 : index
    %12 = vector.load %arg3[%c0_3, %c0_4] : memref<1x8xf32, #tpu.memory_space<vmem>>, vector<1x8xf32>
    %13 = vector.broadcast %12 : vector<1x8xf32> to vector<56x8xf32>
    %14 = arith.addf %11, %13 : vector<56x8xf32>
    %15 = vector.extract_strided_slice %14 {offsets = [0, 0], sizes = [55, 8], strides = [1, 1]} : vector<56x8xf32> to vector<55x8xf32>
    %16 = vector.extract_strided_slice %14 {offsets = [1, 0], sizes = [55, 8], strides = [1, 1]} : vector<56x8xf32> to vector<55x8xf32>
    %17 = arith.maximumf %15, %16 : vector<55x8xf32>
    %c0_5 = arith.constant 0 : index
    %c0_6 = arith.constant 0 : index
    %18 = vector.load %arg8[%c0_5, %c0_6] : memref<64x55xf32, #tpu.memory_space<vmem>>, vector<64x55xf32>
    %cst_7 = arith.constant dense<0.000000e+00> : vector<64x8xf32>
    %19 = tpu.matmul %18, %17, %cst_7 {dimension_numbers = #tpu.dot_dimension_numbers<[1], [0], [0], [1], [0, 0, 1, 1], [], []>} : vector<64x55xf32>, vector<55x8xf32>, vector<64x8xf32> -> vector<64x8xf32>
    %cst_8 = arith.constant 0.000000e+00 : f32
    %20 = vector.broadcast %cst_8 : f32 to vector<64x8xf32>
    %21 = arith.maximumf %19, %20 : vector<64x8xf32>
    %22 = vector.extract_strided_slice %21 {offsets = [0, 0], sizes = [56, 8], strides = [1, 1]} : vector<64x8xf32> to vector<56x8xf32>
    %23 = vector.extract_strided_slice %21 {offsets = [1, 0], sizes = [56, 8], strides = [1, 1]} : vector<64x8xf32> to vector<56x8xf32>
    %24 = vector.extract_strided_slice %21 {offsets = [2, 0], sizes = [56, 8], strides = [1, 1]} : vector<64x8xf32> to vector<56x8xf32>
    %25 = vector.extract_strided_slice %21 {offsets = [3, 0], sizes = [56, 8], strides = [1, 1]} : vector<64x8xf32> to vector<56x8xf32>
    %26 = vector.extract_strided_slice %21 {offsets = [4, 0], sizes = [56, 8], strides = [1, 1]} : vector<64x8xf32> to vector<56x8xf32>
    %27 = vector.extract_strided_slice %21 {offsets = [5, 0], sizes = [56, 8], strides = [1, 1]} : vector<64x8xf32> to vector<56x8xf32>
    %28 = vector.extract_strided_slice %21 {offsets = [6, 0], sizes = [56, 8], strides = [1, 1]} : vector<64x8xf32> to vector<56x8xf32>
    %29 = vector.extract_strided_slice %21 {offsets = [7, 0], sizes = [56, 8], strides = [1, 1]} : vector<64x8xf32> to vector<56x8xf32>
    %30 = tpu.concatenate %22, %23, %24, %25, %26, %27, %28, %29 in 1 : vector<56x8xf32>, vector<56x8xf32>, vector<56x8xf32>, vector<56x8xf32>, vector<56x8xf32>, vector<56x8xf32>, vector<56x8xf32>, vector<56x8xf32> -> vector<56x64xf32>
    %c0_9 = arith.constant 0 : index
    %c0_10 = arith.constant 0 : index
    %31 = vector.load %arg4[%c0_9, %c0_10] : memref<64x16xf32, #tpu.memory_space<vmem>>, vector<64x16xf32>
    %cst_11 = arith.constant dense<0.000000e+00> : vector<56x16xf32>
    %32 = tpu.matmul %30, %31, %cst_11 {dimension_numbers = #tpu.dot_dimension_numbers<[1], [0], [0], [1], [0, 0, 1, 1], [], []>} : vector<56x64xf32>, vector<64x16xf32>, vector<56x16xf32> -> vector<56x16xf32>
    %c0_12 = arith.constant 0 : index
    %c0_13 = arith.constant 0 : index
    %33 = vector.load %arg5[%c0_12, %c0_13] : memref<1x16xf32, #tpu.memory_space<vmem>>, vector<1x16xf32>
    %34 = vector.broadcast %33 : vector<1x16xf32> to vector<56x16xf32>
    %35 = arith.addf %32, %34 : vector<56x16xf32>
    %36 = vector.extract_strided_slice %35 {offsets = [0, 0], sizes = [55, 16], strides = [1, 1]} : vector<56x16xf32> to vector<55x16xf32>
    %37 = vector.extract_strided_slice %35 {offsets = [1, 0], sizes = [55, 16], strides = [1, 1]} : vector<56x16xf32> to vector<55x16xf32>
    %38 = arith.maximumf %36, %37 : vector<55x16xf32>
    %c0_14 = arith.constant 0 : index
    %c0_15 = arith.constant 0 : index
    %39 = vector.load %arg9[%c0_14, %c0_15] : memref<64x55xf32, #tpu.memory_space<vmem>>, vector<64x55xf32>
    %cst_16 = arith.constant dense<0.000000e+00> : vector<64x16xf32>
    %40 = tpu.matmul %39, %38, %cst_16 {dimension_numbers = #tpu.dot_dimension_numbers<[1], [0], [0], [1], [0, 0, 1, 1], [], []>} : vector<64x55xf32>, vector<55x16xf32>, vector<64x16xf32> -> vector<64x16xf32>
    %cst_17 = arith.constant 0.000000e+00 : f32
    %41 = vector.broadcast %cst_17 : f32 to vector<64x16xf32>
    %42 = arith.maximumf %40, %41 : vector<64x16xf32>
    %43 = vector.extract_strided_slice %42 {offsets = [0, 0], sizes = [56, 16], strides = [1, 1]} : vector<64x16xf32> to vector<56x16xf32>
    %44 = vector.extract_strided_slice %42 {offsets = [1, 0], sizes = [56, 16], strides = [1, 1]} : vector<64x16xf32> to vector<56x16xf32>
    %45 = vector.extract_strided_slice %42 {offsets = [2, 0], sizes = [56, 16], strides = [1, 1]} : vector<64x16xf32> to vector<56x16xf32>
    %46 = vector.extract_strided_slice %42 {offsets = [3, 0], sizes = [56, 16], strides = [1, 1]} : vector<64x16xf32> to vector<56x16xf32>
    %47 = vector.extract_strided_slice %42 {offsets = [4, 0], sizes = [56, 16], strides = [1, 1]} : vector<64x16xf32> to vector<56x16xf32>
    %48 = vector.extract_strided_slice %42 {offsets = [5, 0], sizes = [56, 16], strides = [1, 1]} : vector<64x16xf32> to vector<56x16xf32>
    %49 = vector.extract_strided_slice %42 {offsets = [6, 0], sizes = [56, 16], strides = [1, 1]} : vector<64x16xf32> to vector<56x16xf32>
    %50 = vector.extract_strided_slice %42 {offsets = [7, 0], sizes = [56, 16], strides = [1, 1]} : vector<64x16xf32> to vector<56x16xf32>
    %51 = tpu.concatenate %43, %44, %45, %46, %47, %48, %49, %50 in 1 : vector<56x16xf32>, vector<56x16xf32>, vector<56x16xf32>, vector<56x16xf32>, vector<56x16xf32>, vector<56x16xf32>, vector<56x16xf32>, vector<56x16xf32> -> vector<56x128xf32>
    %c0_18 = arith.constant 0 : index
    %c0_19 = arith.constant 0 : index
    %52 = vector.load %arg6[%c0_18, %c0_19] : memref<128x32xf32, #tpu.memory_space<vmem>>, vector<128x32xf32>
    %cst_20 = arith.constant dense<0.000000e+00> : vector<56x32xf32>
    %53 = tpu.matmul %51, %52, %cst_20 {dimension_numbers = #tpu.dot_dimension_numbers<[1], [0], [0], [1], [0, 0, 1, 1], [], []>} : vector<56x128xf32>, vector<128x32xf32>, vector<56x32xf32> -> vector<56x32xf32>
    %c0_21 = arith.constant 0 : index
    %c0_22 = arith.constant 0 : index
    %54 = vector.load %arg7[%c0_21, %c0_22] : memref<1x32xf32, #tpu.memory_space<vmem>>, vector<1x32xf32>
    %55 = vector.broadcast %54 : vector<1x32xf32> to vector<56x32xf32>
    %56 = arith.addf %53, %55 : vector<56x32xf32>
    %57 = vector.extract_strided_slice %56 {offsets = [0, 0], sizes = [55, 32], strides = [1, 1]} : vector<56x32xf32> to vector<55x32xf32>
    %58 = vector.extract_strided_slice %56 {offsets = [1, 0], sizes = [55, 32], strides = [1, 1]} : vector<56x32xf32> to vector<55x32xf32>
    %59 = arith.maximumf %57, %58 : vector<55x32xf32>
    %c0_23 = arith.constant 0 : index
    %c0_24 = arith.constant 0 : index
    %60 = vector.load %arg10[%c0_23, %c0_24] : memref<6x55xf32, #tpu.memory_space<vmem>>, vector<6x55xf32>
    %cst_25 = arith.constant dense<0.000000e+00> : vector<6x32xf32>
    %61 = tpu.matmul %60, %59, %cst_25 {dimension_numbers = #tpu.dot_dimension_numbers<[1], [0], [0], [1], [0, 0, 1, 1], [], []>} : vector<6x55xf32>, vector<55x32xf32>, vector<6x32xf32> -> vector<6x32xf32>
    %cst_26 = arith.constant 0.000000e+00 : f32
    %62 = vector.broadcast %cst_26 : f32 to vector<6x32xf32>
    %63 = arith.maximumf %61, %62 : vector<6x32xf32>
    %64 = vector.extract_strided_slice %63 {offsets = [0, 0], sizes = [2, 32], strides = [1, 1]} : vector<6x32xf32> to vector<2x32xf32>
    %65 = vector.extract_strided_slice %63 {offsets = [2, 0], sizes = [2, 32], strides = [1, 1]} : vector<6x32xf32> to vector<2x32xf32>
    %66 = vector.extract_strided_slice %63 {offsets = [4, 0], sizes = [2, 32], strides = [1, 1]} : vector<6x32xf32> to vector<2x32xf32>
    %67 = tpu.concatenate %64, %65, %66 in 1 : vector<2x32xf32>, vector<2x32xf32>, vector<2x32xf32> -> vector<2x96xf32>
    %c0_27 = arith.constant 0 : index
    %c0_28 = arith.constant 0 : index
    %68 = vector.load %arg11[%c0_27, %c0_28] : memref<96x384xf32, #tpu.memory_space<vmem>>, vector<96x384xf32>
    %cst_29 = arith.constant dense<0.000000e+00> : vector<2x384xf32>
    %69 = tpu.matmul %67, %68, %cst_29 {dimension_numbers = #tpu.dot_dimension_numbers<[1], [0], [0], [1], [0, 0, 1, 1], [], []>} : vector<2x96xf32>, vector<96x384xf32>, vector<2x384xf32> -> vector<2x384xf32>
    %c0_30 = arith.constant 0 : index
    %c0_31 = arith.constant 0 : index
    %70 = vector.load %arg12[%c0_30, %c0_31] : memref<1x384xf32, #tpu.memory_space<vmem>>, vector<1x384xf32>
    %71 = vector.broadcast %70 : vector<1x384xf32> to vector<2x384xf32>
    %72 = arith.addf %69, %71 : vector<2x384xf32>
    %73 = vector.extract_strided_slice %72 {offsets = [0, 0], sizes = [2, 128], strides = [1, 1]} : vector<2x384xf32> to vector<2x128xf32>
    %74 = arith.negf %73 : vector<2x128xf32>
    %75 = math.exp %74 : vector<2x128xf32>
    %cst_32 = arith.constant 1.000000e+00 : f32
    %76 = vector.broadcast %cst_32 : f32 to vector<2x128xf32>
    %77 = arith.addf %76, %75 : vector<2x128xf32>
    %78 = arith.divf %76, %77 : vector<2x128xf32>
    %79 = vector.extract_strided_slice %72 {offsets = [0, 128], sizes = [2, 128], strides = [1, 1]} : vector<2x384xf32> to vector<2x128xf32>
    %80 = math.tanh %79 : vector<2x128xf32>
    %81 = vector.extract_strided_slice %72 {offsets = [0, 256], sizes = [2, 128], strides = [1, 1]} : vector<2x384xf32> to vector<2x128xf32>
    %82 = arith.negf %81 : vector<2x128xf32>
    %83 = math.exp %82 : vector<2x128xf32>
    %cst_33 = arith.constant 1.000000e+00 : f32
    %84 = vector.broadcast %cst_33 : f32 to vector<2x128xf32>
    %85 = arith.addf %84, %83 : vector<2x128xf32>
    %86 = arith.divf %84, %85 : vector<2x128xf32>
    %87 = arith.mulf %78, %80 : vector<2x128xf32>
    %88 = math.tanh %87 : vector<2x128xf32>
    %89 = arith.mulf %86, %88 : vector<2x128xf32>
    %c0_34 = arith.constant 0 : index
    %c0_35 = arith.constant 0 : index
    %90 = vector.load %arg13[%c0_34, %c0_35] : memref<128x256xf32, #tpu.memory_space<vmem>>, vector<128x256xf32>
    %cst_36 = arith.constant dense<0.000000e+00> : vector<2x256xf32>
    %91 = tpu.matmul %89, %90, %cst_36 {dimension_numbers = #tpu.dot_dimension_numbers<[1], [0], [0], [1], [0, 0, 1, 1], [], []>} : vector<2x128xf32>, vector<128x256xf32>, vector<2x256xf32> -> vector<2x256xf32>
    %c0_37 = arith.constant 0 : index
    %c0_38 = arith.constant 0 : index
    %92 = vector.load %arg14[%c0_37, %c0_38] : memref<1x256xf32, #tpu.memory_space<vmem>>, vector<1x256xf32>
    %93 = vector.broadcast %92 : vector<1x256xf32> to vector<2x256xf32>
    %94 = arith.addf %91, %93 : vector<2x256xf32>
    %cst_39 = arith.constant 0.000000e+00 : f32
    %95 = vector.broadcast %cst_39 : f32 to vector<2x256xf32>
    %96 = arith.maximumf %94, %95 : vector<2x256xf32>
    %c0_40 = arith.constant 0 : index
    %c0_41 = arith.constant 0 : index
    %97 = vector.load %arg15[%c0_40, %c0_41] : memref<256x32xf32, #tpu.memory_space<vmem>>, vector<256x32xf32>
    %cst_42 = arith.constant dense<0.000000e+00> : vector<2x32xf32>
    %98 = tpu.matmul %96, %97, %cst_42 {dimension_numbers = #tpu.dot_dimension_numbers<[1], [0], [0], [1], [0, 0, 1, 1], [], []>} : vector<2x256xf32>, vector<256x32xf32>, vector<2x32xf32> -> vector<2x32xf32>
    %c0_43 = arith.constant 0 : index
    %c0_44 = arith.constant 0 : index
    %99 = vector.load %arg16[%c0_43, %c0_44] : memref<1x32xf32, #tpu.memory_space<vmem>>, vector<1x32xf32>
    %100 = vector.broadcast %99 : vector<1x32xf32> to vector<2x32xf32>
    %101 = arith.addf %98, %100 : vector<2x32xf32>
    %cst_45 = arith.constant 0.000000e+00 : f32
    %102 = vector.broadcast %cst_45 : f32 to vector<2x32xf32>
    %103 = arith.maximumf %101, %102 : vector<2x32xf32>
    %c0_46 = arith.constant 0 : index
    %c0_47 = arith.constant 0 : index
    %104 = vector.load %arg17[%c0_46, %c0_47] : memref<32x1xf32, #tpu.memory_space<vmem>>, vector<32x1xf32>
    %cst_48 = arith.constant dense<0.000000e+00> : vector<2x1xf32>
    %105 = tpu.matmul %103, %104, %cst_48 {dimension_numbers = #tpu.dot_dimension_numbers<[1], [0], [0], [1], [0, 0, 1, 1], [], []>} : vector<2x32xf32>, vector<32x1xf32>, vector<2x1xf32> -> vector<2x1xf32>
    %c0_49 = arith.constant 0 : index
    %c0_50 = arith.constant 0 : index
    %106 = vector.load %arg18[%c0_49, %c0_50] : memref<1x1xf32, #tpu.memory_space<vmem>>, vector<1x1xf32>
    %107 = vector.broadcast %106 : vector<1x1xf32> to vector<2x1xf32>
    %108 = arith.addf %105, %107 : vector<2x1xf32>
    %c0_51 = arith.constant 0 : index
    %c0_52 = arith.constant 0 : index
    %109 = vector.load %arg19[%c0_51, %c0_52] : memref<2x1xf32, #tpu.memory_space<vmem>>, vector<2x1xf32>
    tpu.vector_store %arg19[%c0_51, %c0_52], %108 {strides = array<i32>} : memref<2x1xf32, #tpu.memory_space<vmem>>, vector<2x1xf32>,
    return
  }
  func.func @transform_0(%arg0: i32) -> (i32, i32) {
    %c0_i32 = arith.constant 0 : i32
    %c0_i32_0 = arith.constant 0 : i32
    return %arg0, %c0_i32 : i32, i32
  }
  func.func @transform_1(%arg0: i32) -> (i32, i32) {
    %c0_i32 = arith.constant 0 : i32
    %c0_i32_0 = arith.constant 0 : i32
    %c0_i32_1 = arith.constant 0 : i32
    return %c0_i32, %c0_i32_0 : i32, i32
  }
  func.func @transform_2(%arg0: i32) -> (i32, i32) {
    %c0_i32 = arith.constant 0 : i32
    %c0_i32_0 = arith.constant 0 : i32
    %c0_i32_1 = arith.constant 0 : i32
    return %c0_i32, %c0_i32_0 : i32, i32
  }
  func.func @transform_3(%arg0: i32) -> (i32, i32) {
    %c0_i32 = arith.constant 0 : i32
    %c0_i32_0 = arith.constant 0 : i32
    %c0_i32_1 = arith.constant 0 : i32
    return %c0_i32, %c0_i32_0 : i32, i32
  }
  func.func @transform_4(%arg0: i32) -> (i32, i32) {
    %c0_i32 = arith.constant 0 : i32
    %c0_i32_0 = arith.constant 0 : i32
    %c0_i32_1 = arith.constant 0 : i32
    return %c0_i32, %c0_i32_0 : i32, i32
  }
  func.func @transform_5(%arg0: i32) -> (i32, i32) {
    %c0_i32 = arith.constant 0 : i32
    %c0_i32_0 = arith.constant 0 : i32
    %c0_i32_1 = arith.constant 0 : i32
    return %c0_i32, %c0_i32_0 : i32, i32
  }
  func.func @transform_6(%arg0: i32) -> (i32, i32) {
    %c0_i32 = arith.constant 0 : i32
    %c0_i32_0 = arith.constant 0 : i32
    %c0_i32_1 = arith.constant 0 : i32
    return %c0_i32, %c0_i32_0 : i32, i32
  }
  func.func @transform_7(%arg0: i32) -> (i32, i32) {
    %c0_i32 = arith.constant 0 : i32
    %c0_i32_0 = arith.constant 0 : i32
    %c0_i32_1 = arith.constant 0 : i32
    return %c0_i32, %c0_i32_0 : i32, i32
  }
  func.func @transform_8(%arg0: i32) -> (i32, i32) {
    %c0_i32 = arith.constant 0 : i32
    %c0_i32_0 = arith.constant 0 : i32
    %c0_i32_1 = arith.constant 0 : i32
    return %c0_i32, %c0_i32_0 : i32, i32
  }
  func.func @transform_9(%arg0: i32) -> (i32, i32) {
    %c0_i32 = arith.constant 0 : i32
    %c0_i32_0 = arith.constant 0 : i32
    %c0_i32_1 = arith.constant 0 : i32
    return %c0_i32, %c0_i32_0 : i32, i32
  }
  func.func @transform_10(%arg0: i32) -> (i32, i32) {
    %c0_i32 = arith.constant 0 : i32
    %c0_i32_0 = arith.constant 0 : i32
    %c0_i32_1 = arith.constant 0 : i32
    return %c0_i32, %c0_i32_0 : i32, i32
  }
  func.func @transform_11(%arg0: i32) -> (i32, i32) {
    %c0_i32 = arith.constant 0 : i32
    %c0_i32_0 = arith.constant 0 : i32
    %c0_i32_1 = arith.constant 0 : i32
    return %c0_i32, %c0_i32_0 : i32, i32
  }
  func.func @transform_12(%arg0: i32) -> (i32, i32) {
    %c0_i32 = arith.constant 0 : i32
    %c0_i32_0 = arith.constant 0 : i32
    %c0_i32_1 = arith.constant 0 : i32
    return %c0_i32, %c0_i32_0 : i32, i32
  }
  func.func @transform_13(%arg0: i32) -> (i32, i32) {
    %c0_i32 = arith.constant 0 : i32
    %c0_i32_0 = arith.constant 0 : i32
    %c0_i32_1 = arith.constant 0 : i32
    return %c0_i32, %c0_i32_0 : i32, i32
  }
  func.func @transform_14(%arg0: i32) -> (i32, i32) {
    %c0_i32 = arith.constant 0 : i32
    %c0_i32_0 = arith.constant 0 : i32
    %c0_i32_1 = arith.constant 0 : i32
    return %c0_i32, %c0_i32_0 : i32, i32
  }
  func.func @transform_15(%arg0: i32) -> (i32, i32) {
    %c0_i32 = arith.constant 0 : i32
    %c0_i32_0 = arith.constant 0 : i32
    %c0_i32_1 = arith.constant 0 : i32
    return %c0_i32, %c0_i32_0 : i32, i32
  }
  func.func @transform_16(%arg0: i32) -> (i32, i32) {
    %c0_i32 = arith.constant 0 : i32
    %c0_i32_0 = arith.constant 0 : i32
    %c0_i32_1 = arith.constant 0 : i32
    return %c0_i32, %c0_i32_0 : i32, i32
  }
  func.func @transform_17(%arg0: i32) -> (i32, i32) {
    %c0_i32 = arith.constant 0 : i32
    %c0_i32_0 = arith.constant 0 : i32
    %c0_i32_1 = arith.constant 0 : i32
    return %c0_i32, %c0_i32_0 : i32, i32
  }
  func.func @transform_18(%arg0: i32) -> (i32, i32) {
    %c0_i32 = arith.constant 0 : i32
    %c0_i32_0 = arith.constant 0 : i32
    return %arg0, %c0_i32 : i32, i32
  }
}

</mosaic_0001>

<llo_original>
// kernel: tpu_custom_call.1
$region0: #{tpu_custom_call.1}
  #allocation0 [shape = 'u32[]', space=smem, size = 0x4, offset = 0x4, fixed_abs, tag = 'smem constant byte address 0x4 - core index']
  #allocation1 [shape = 'u32[72,128]{1,0:T(1,128)}', space=vmem, size = 0x9000, scoped, tag = 'internal scratch']
  #allocation2 [shape = 'f32[1,1]{1,0:T(1,128)S(1)}', space=vmem, size = 0x200, scoped, tag = 'scoped memory for tpu_custom_call.1']
  %s0 = inlined_call_operand.vmem [shape: f32[64,4], index: 0, kind: input, shape index: {}]
  %s1 = inlined_call_operand.vmem [shape: f32[32,8], index: 1, kind: input, shape index: {}]
  %s2 = inlined_call_operand.vmem [shape: f32[1,8], index: 2, kind: input, shape index: {}]
  %s3 = inlined_call_operand.vmem [shape: f32[64,16], index: 3, kind: input, shape index: {}]
  %s4 = inlined_call_operand.vmem [shape: f32[1,16], index: 4, kind: input, shape index: {}]
  %s5 = inlined_call_operand.vmem [shape: f32[128,32], index: 5, kind: input, shape index: {}]
  %s6 = inlined_call_operand.vmem [shape: f32[1,32], index: 6, kind: input, shape index: {}]
  %s7 = inlined_call_operand.vmem [shape: f32[64,55], index: 7, kind: input, shape index: {}]
  %s8 = inlined_call_operand.vmem [shape: f32[64,55], index: 8, kind: input, shape index: {}]
  %s9 = inlined_call_operand.vmem [shape: f32[6,55], index: 9, kind: input, shape index: {}]
  %s10 = inlined_call_operand.vmem [shape: f32[96,384], index: 10, kind: input, shape index: {}]
  %s11 = inlined_call_operand.vmem [shape: f32[1,384], index: 11, kind: input, shape index: {}]
  %s12 = inlined_call_operand.hbm [shape: f32[128,256], index: 12, kind: input, shape index: {}]
  %s13 = inlined_call_operand.vmem [shape: f32[1,256], index: 13, kind: input, shape index: {}]
  %s14 = inlined_call_operand.vmem [shape: f32[256,32], index: 14, kind: input, shape index: {}]
  %s15 = inlined_call_operand.vmem [shape: f32[1,32], index: 15, kind: input, shape index: {}]
  %s16 = inlined_call_operand.vmem [shape: f32[32,1], index: 16, kind: input, shape index: {}]
  %s17 = inlined_call_operand.<no memory space> [shape: f32[1,1], index: 17, kind: input, shape index: {}]
  %s18 = inlined_call_operand.vmem [shape: f32[2,1], index: 18, kind: output, shape index: {}]
  %s19 = sld [smem:[#allocation0]]
  $region86: #{tpu_custom_call.1} parent=0
    _
  %s21 = ssub.s32 1, %s19
  %s22 = scalar_select 0, %s21, %s19
  %v23 = vstv %s17
  %24 = vst [vmem:[#allocation2] sm:$0x1] %v23
  $region1: #{tpu_custom_call.1} parent=0
    #allocation3 [shape = 'u8[131072]{0}', space=vmem, size = 0x20000, scoped, tag = 'input window, operand 12, single buffered']
    #allocation4 [shape = 's32[1]{0}', space=sflag, size = 0x4, scoped, tag = 'scoped memory for tpu_custom_call.1']
    %25 = vsyncpa [#allocation4], 0
    // Predicated region
    $region2: #{tpu_custom_call.1} parent=1 // pred_check
      _
    $region3: #{tpu_custom_call.1} parent=1 // pred_check_branch
      %27 = sbr.rel (0) target = $region5
    $region4: #{tpu_custom_call.1} parent=1 // pred_region
      _
    $region5: #{tpu_custom_call.1} parent=1 // pred_fallthru
      _
    // Predicated region
    $region6: #{tpu_custom_call.1} parent=1 // pred_check
      _
    $region7: #{tpu_custom_call.1} parent=1 // pred_check_branch
      %29 = sbr.rel (0) target = $region9
    $region8: #{tpu_custom_call.1} parent=1 // pred_region
      _
    $region9: #{tpu_custom_call.1} parent=1 // pred_fallthru
      _
    // Predicated region
    $region10: #{tpu_custom_call.1} parent=1 // pred_check
      _
    $region11: #{tpu_custom_call.1} parent=1 // pred_check_branch
      %31 = sbr.rel (0) target = $region13
    $region12: #{tpu_custom_call.1} parent=1 // pred_region
      _
    $region13: #{tpu_custom_call.1} parent=1 // pred_fallthru
      _
    // Predicated region
    $region14: #{tpu_custom_call.1} parent=1 // pred_check
      _
    $region15: #{tpu_custom_call.1} parent=1 // pred_check_branch
      %33 = sbr.rel (0) target = $region17
    $region16: #{tpu_custom_call.1} parent=1 // pred_region
      _
    $region17: #{tpu_custom_call.1} parent=1 // pred_fallthru
      _
    // Predicated region
    $region18: #{tpu_custom_call.1} parent=1 // pred_check
      _
    $region19: #{tpu_custom_call.1} parent=1 // pred_check_branch
      %35 = sbr.rel (0) target = $region21
    $region20: #{tpu_custom_call.1} parent=1 // pred_region
      _
    $region21: #{tpu_custom_call.1} parent=1 // pred_fallthru
      _
    // Predicated region
    $region22: #{tpu_custom_call.1} parent=1 // pred_check
      _
    $region23: #{tpu_custom_call.1} parent=1 // pred_check_branch
      %37 = sbr.rel (0) target = $region25
    $region24: #{tpu_custom_call.1} parent=1 // pred_region
      _
    $region25: #{tpu_custom_call.1} parent=1 // pred_fallthru
      _
    // Predicated region
    $region26: #{tpu_custom_call.1} parent=1 // pred_check
      _
    $region27: #{tpu_custom_call.1} parent=1 // pred_check_branch
      %39 = sbr.rel (0) target = $region29
    $region28: #{tpu_custom_call.1} parent=1 // pred_region
      _
    $region29: #{tpu_custom_call.1} parent=1 // pred_fallthru
      _
    // Predicated region
    $region30: #{tpu_custom_call.1} parent=1 // pred_check
      _
    $region31: #{tpu_custom_call.1} parent=1 // pred_check_branch
      %41 = sbr.rel (0) target = $region33
    $region32: #{tpu_custom_call.1} parent=1 // pred_region
      _
    $region33: #{tpu_custom_call.1} parent=1 // pred_fallthru
      _
    // Predicated region
    $region34: #{tpu_custom_call.1} parent=1 // pred_check
      _
    $region35: #{tpu_custom_call.1} parent=1 // pred_check_branch
      %43 = sbr.rel (0) target = $region37
    $region36: #{tpu_custom_call.1} parent=1 // pred_region
      _
    $region37: #{tpu_custom_call.1} parent=1 // pred_fallthru
      _
    // Predicated region
    $region38: #{tpu_custom_call.1} parent=1 // pred_check
      _
    $region39: #{tpu_custom_call.1} parent=1 // pred_check_branch
      %45 = sbr.rel (0) target = $region41
    $region40: #{tpu_custom_call.1} parent=1 // pred_region
      _
    $region41: #{tpu_custom_call.1} parent=1 // pred_fallthru
      _
    // Predicated region
    $region42: #{tpu_custom_call.1} parent=1 // pred_check
      _
    $region43: #{tpu_custom_call.1} parent=1 // pred_check_branch
      %47 = sbr.rel (0) target = $region45
    $region44: #{tpu_custom_call.1} parent=1 // pred_region
      _
    $region45: #{tpu_custom_call.1} parent=1 // pred_fallthru
      _
    // Predicated region
    $region46: #{tpu_custom_call.1} parent=1 // pred_check
      _
    $region47: #{tpu_custom_call.1} parent=1 // pred_check_branch
      %49 = sbr.rel (0) target = $region49
    $region48: #{tpu_custom_call.1} parent=1 // pred_region
      _
    $region49: #{tpu_custom_call.1} parent=1 // pred_fallthru
      _
    // Predicated region
    $region50: #{tpu_custom_call.1} parent=1 // pred_check
      _
    $region51: #{tpu_custom_call.1} parent=1 // pred_check_branch
      %51 = sbr.rel (0) target = $region53
    $region52: #{tpu_custom_call.1} parent=1 // pred_region
      %53 = vsyncadd [#allocation4], 0
      %s54 = sshll.u32 %s12, 4
      %s55 = int_to_ptr.hbm [resolvable:$true] %s54
      %s56 = sshll.u32 [#allocation3], 4
      %s57 = int_to_ptr.vmem [resolvable:$true] %s56
      %62 = dma.hbm_to_vmem [thread:$0]  %s55, 4096, %s57, [#allocation4], 256, 256, 16
    $region53: #{tpu_custom_call.1} parent=1 // pred_fallthru
      _
    // Predicated region
    $region54: #{tpu_custom_call.1} parent=1 // pred_check
      _
    $region55: #{tpu_custom_call.1} parent=1 // pred_check_branch
      %64 = sbr.rel (0) target = $region57
    $region56: #{tpu_custom_call.1} parent=1 // pred_region
      _
    $region57: #{tpu_custom_call.1} parent=1 // pred_fallthru
      _
    // Predicated region
    $region58: #{tpu_custom_call.1} parent=1 // pred_check
      _
    $region59: #{tpu_custom_call.1} parent=1 // pred_check_branch
      %66 = sbr.rel (0) target = $region61
    $region60: #{tpu_custom_call.1} parent=1 // pred_region
      _
    $region61: #{tpu_custom_call.1} parent=1 // pred_fallthru
      _
    // Predicated region
    $region62: #{tpu_custom_call.1} parent=1 // pred_check
      _
    $region63: #{tpu_custom_call.1} parent=1 // pred_check_branch
      %68 = sbr.rel (0) target = $region65
    $region64: #{tpu_custom_call.1} parent=1 // pred_region
      _
    $region65: #{tpu_custom_call.1} parent=1 // pred_fallthru
      _
    // Predicated region
    $region66: #{tpu_custom_call.1} parent=1 // pred_check
      _
    $region67: #{tpu_custom_call.1} parent=1 // pred_check_branch
      %70 = sbr.rel (0) target = $region69
    $region68: #{tpu_custom_call.1} parent=1 // pred_region
      _
    $region69: #{tpu_custom_call.1} parent=1 // pred_fallthru
      _
    // Predicated region
    $region70: #{tpu_custom_call.1} parent=1 // pred_check
      _
    $region71: #{tpu_custom_call.1} parent=1 // pred_check_branch
      %72 = sbr.rel (0) target = $region73
    $region72: #{tpu_custom_call.1} parent=1 // pred_region
      _
    $region73: #{tpu_custom_call.1} parent=1 // pred_fallthru
      _
    // Predicated region
    $region74: #{tpu_custom_call.1} parent=1 // pred_check
      _
    $region75: #{tpu_custom_call.1} parent=1 // pred_check_branch
      %74 = sbr.rel (0) target = $region77
    $region76: #{tpu_custom_call.1} parent=1 // pred_region
      %76 = dma.done [#allocation4], 4096
    $region77: #{tpu_custom_call.1} parent=1 // pred_fallthru
      _
    %v77 = vld [vmem:[%s0] sm:$0xff]
    %v78 = vld [vmem:[%s0 + $0x8] sm:$0xff]
    %v79 = vld [vmem:[%s0 + $0x10] sm:$0xff]
    %v80 = vld [vmem:[%s0 + $0x18] sm:$0xff]
    %v81 = vld [vmem:[%s0 + $0x20] sm:$0xff]
    %v82 = vld [vmem:[%s0 + $0x28] sm:$0xff]
    %v83 = vld [vmem:[%s0 + $0x30] sm:$0xff]
    %v84 = vld [vmem:[%s0 + $0x38] sm:$0xff]
    %vm93 = vcmask 1046528
    %v94 = vrot.slane %v77, 1
    %v95 = vrot.slane %v78, 1
    %v96 = vsel %vm93, %v94, %v95
    %v97 = vrot.slane %v79, 1
    %v98 = vsel %vm93, %v95, %v97
    %v99 = vrot.slane %v80, 1
    %v100 = vsel %vm93, %v97, %v99
    %v101 = vrot.slane %v81, 1
    %v102 = vsel %vm93, %v99, %v101
    %v103 = vrot.slane %v82, 1
    %v104 = vsel %vm93, %v101, %v103
    %v105 = vrot.slane %v83, 1
    %v106 = vsel %vm93, %v103, %v105
    %v107 = vrot.slane %v84, 1
    %v108 = vsel %vm93, %v105, %v107
    %109 = vrot.lane.b32.xlu0 %v96, 4
    %v110 = vpop.permute.xlu0 %109
    %111 = vrot.lane.b32.xlu0 %v98, 4
    %v112 = vpop.permute.xlu0 %111
    %113 = vrot.lane.b32.xlu0 %v100, 4
    %v114 = vpop.permute.xlu0 %113
    %115 = vrot.lane.b32.xlu0 %v102, 4
    %v116 = vpop.permute.xlu0 %115
    %117 = vrot.lane.b32.xlu0 %v104, 4
    %v118 = vpop.permute.xlu0 %117
    %119 = vrot.lane.b32.xlu0 %v106, 4
    %v120 = vpop.permute.xlu0 %119
    %121 = vrot.lane.b32.xlu0 %v108, 4
    %v122 = vpop.permute.xlu0 %121
    %vm130 = vcmask 1045504
    %v131 = vrot.slane %v77, 2
    %v132 = vrot.slane %v78, 2
    %v133 = vsel %vm130, %v131, %v132
    %v134 = vrot.slane %v79, 2
    %v135 = vsel %vm130, %v132, %v134
    %v136 = vrot.slane %v80, 2
    %v137 = vsel %vm130, %v134, %v136
    %v138 = vrot.slane %v81, 2
    %v139 = vsel %vm130, %v136, %v138
    %v140 = vrot.slane %v82, 2
    %v141 = vsel %vm130, %v138, %v140
    %v142 = vrot.slane %v83, 2
    %v143 = vsel %vm130, %v140, %v142
    %v144 = vrot.slane %v84, 2
    %v145 = vsel %vm130, %v142, %v144
    %146 = vrot.lane.b32.xlu0 %v133, 8
    %v147 = vpop.permute.xlu0 %146
    %148 = vrot.lane.b32.xlu0 %v135, 8
    %v149 = vpop.permute.xlu0 %148
    %150 = vrot.lane.b32.xlu0 %v137, 8
    %v151 = vpop.permute.xlu0 %150
    %152 = vrot.lane.b32.xlu0 %v139, 8
    %v153 = vpop.permute.xlu0 %152
    %154 = vrot.lane.b32.xlu0 %v141, 8
    %v155 = vpop.permute.xlu0 %154
    %156 = vrot.lane.b32.xlu0 %v143, 8
    %v157 = vpop.permute.xlu0 %156
    %158 = vrot.lane.b32.xlu0 %v145, 8
    %v159 = vpop.permute.xlu0 %158
    %vm167 = vcmask 1044480
    %v168 = vrot.slane %v77, 3
    %v169 = vrot.slane %v78, 3
    %v170 = vsel %vm167, %v168, %v169
    %v171 = vrot.slane %v79, 3
    %v172 = vsel %vm167, %v169, %v171
    %v173 = vrot.slane %v80, 3
    %v174 = vsel %vm167, %v171, %v173
    %v175 = vrot.slane %v81, 3
    %v176 = vsel %vm167, %v173, %v175
    %v177 = vrot.slane %v82, 3
    %v178 = vsel %vm167, %v175, %v177
    %v179 = vrot.slane %v83, 3
    %v180 = vsel %vm167, %v177, %v179
    %v181 = vrot.slane %v84, 3
    %v182 = vsel %vm167, %v179, %v181
    %183 = vrot.lane.b32.xlu0 %v170, 12
    %v184 = vpop.permute.xlu0 %183
    %185 = vrot.lane.b32.xlu0 %v172, 12
    %v186 = vpop.permute.xlu0 %185
    %187 = vrot.lane.b32.xlu0 %v174, 12
    %v188 = vpop.permute.xlu0 %187
    %189 = vrot.lane.b32.xlu0 %v176, 12
    %v190 = vpop.permute.xlu0 %189
    %191 = vrot.lane.b32.xlu0 %v178, 12
    %v192 = vpop.permute.xlu0 %191
    %193 = vrot.lane.b32.xlu0 %v180, 12
    %v194 = vpop.permute.xlu0 %193
    %195 = vrot.lane.b32.xlu0 %v182, 12
    %v196 = vpop.permute.xlu0 %195
    %vm204 = vcmask 1043456
    %v205 = vrot.slane %v77, 4
    %v206 = vrot.slane %v78, 4
    %v207 = vsel %vm204, %v205, %v206
    %v208 = vrot.slane %v79, 4
    %v209 = vsel %vm204, %v206, %v208
    %v210 = vrot.slane %v80, 4
    %v211 = vsel %vm204, %v208, %v210
    %v212 = vrot.slane %v81, 4
    %v213 = vsel %vm204, %v210, %v212
    %v214 = vrot.slane %v82, 4
    %v215 = vsel %vm204, %v212, %v214
    %v216 = vrot.slane %v83, 4
    %v217 = vsel %vm204, %v214, %v216
    %v218 = vrot.slane %v84, 4
    %v219 = vsel %vm204, %v216, %v218
    %220 = vrot.lane.b32.xlu0 %v207, 16
    %v221 = vpop.permute.xlu0 %220
    %222 = vrot.lane.b32.xlu0 %v209, 16
    %v223 = vpop.permute.xlu0 %222
    %224 = vrot.lane.b32.xlu0 %v211, 16
    %v225 = vpop.permute.xlu0 %224
    %226 = vrot.lane.b32.xlu0 %v213, 16
    %v227 = vpop.permute.xlu0 %226
    %228 = vrot.lane.b32.xlu0 %v215, 16
    %v229 = vpop.permute.xlu0 %228
    %230 = vrot.lane.b32.xlu0 %v217, 16
    %v231 = vpop.permute.xlu0 %230
    %232 = vrot.lane.b32.xlu0 %v219, 16
    %v233 = vpop.permute.xlu0 %232
    %vm241 = vcmask 1042432
    %v242 = vrot.slane %v77, 5
    %v243 = vrot.slane %v78, 5
    %v244 = vsel %vm241, %v242, %v243
    %v245 = vrot.slane %v79, 5
    %v246 = vsel %vm241, %v243, %v245
    %v247 = vrot.slane %v80, 5
    %v248 = vsel %vm241, %v245, %v247
    %v249 = vrot.slane %v81, 5
    %v250 = vsel %vm241, %v247, %v249
    %v251 = vrot.slane %v82, 5
    %v252 = vsel %vm241, %v249, %v251
    %v253 = vrot.slane %v83, 5
    %v254 = vsel %vm241, %v251, %v253
    %v255 = vrot.slane %v84, 5
    %v256 = vsel %vm241, %v253, %v255
    %257 = vrot.lane.b32.xlu0 %v244, 20
    %v258 = vpop.permute.xlu0 %257
    %259 = vrot.lane.b32.xlu0 %v246, 20
    %v260 = vpop.permute.xlu0 %259
    %261 = vrot.lane.b32.xlu0 %v248, 20
    %v262 = vpop.permute.xlu0 %261
    %263 = vrot.lane.b32.xlu0 %v250, 20
    %v264 = vpop.permute.xlu0 %263
    %265 = vrot.lane.b32.xlu0 %v252, 20
    %v266 = vpop.permute.xlu0 %265
    %267 = vrot.lane.b32.xlu0 %v254, 20
    %v268 = vpop.permute.xlu0 %267
    %269 = vrot.lane.b32.xlu0 %v256, 20
    %v270 = vpop.permute.xlu0 %269
    %vm278 = vcmask 1041408
    %v279 = vrot.slane %v77, 6
    %v280 = vrot.slane %v78, 6
    %v281 = vsel %vm278, %v279, %v280
    %v282 = vrot.slane %v79, 6
    %v283 = vsel %vm278, %v280, %v282
    %v284 = vrot.slane %v80, 6
    %v285 = vsel %vm278, %v282, %v284
    %v286 = vrot.slane %v81, 6
    %v287 = vsel %vm278, %v284, %v286
    %v288 = vrot.slane %v82, 6
    %v289 = vsel %vm278, %v286, %v288
    %v290 = vrot.slane %v83, 6
    %v291 = vsel %vm278, %v288, %v290
    %v292 = vrot.slane %v84, 6
    %v293 = vsel %vm278, %v290, %v292
    %294 = vrot.lane.b32.xlu0 %v281, 24
    %v295 = vpop.permute.xlu0 %294
    %296 = vrot.lane.b32.xlu0 %v283, 24
    %v297 = vpop.permute.xlu0 %296
    %298 = vrot.lane.b32.xlu0 %v285, 24
    %v299 = vpop.permute.xlu0 %298
    %300 = vrot.lane.b32.xlu0 %v287, 24
    %v301 = vpop.permute.xlu0 %300
    %302 = vrot.lane.b32.xlu0 %v289, 24
    %v303 = vpop.permute.xlu0 %302
    %304 = vrot.lane.b32.xlu0 %v291, 24
    %v305 = vpop.permute.xlu0 %304
    %306 = vrot.lane.b32.xlu0 %v293, 24
    %v307 = vpop.permute.xlu0 %306
    %vm315 = vcmask 1040384
    %v316 = vrot.slane %v77, 7
    %v317 = vrot.slane %v78, 7
    %v318 = vsel %vm315, %v316, %v317
    %v319 = vrot.slane %v79, 7
    %v320 = vsel %vm315, %v317, %v319
    %v321 = vrot.slane %v80, 7
    %v322 = vsel %vm315, %v319, %v321
    %v323 = vrot.slane %v81, 7
    %v324 = vsel %vm315, %v321, %v323
    %v325 = vrot.slane %v82, 7
    %v326 = vsel %vm315, %v323, %v325
    %v327 = vrot.slane %v83, 7
    %v328 = vsel %vm315, %v325, %v327
    %v329 = vrot.slane %v84, 7
    %v330 = vsel %vm315, %v327, %v329
    %331 = vrot.lane.b32.xlu0 %v318, 28
    %v332 = vpop.permute.xlu0 %331
    %333 = vrot.lane.b32.xlu0 %v320, 28
    %v334 = vpop.permute.xlu0 %333
    %335 = vrot.lane.b32.xlu0 %v322, 28
    %v336 = vpop.permute.xlu0 %335
    %337 = vrot.lane.b32.xlu0 %v324, 28
    %v338 = vpop.permute.xlu0 %337
    %339 = vrot.lane.b32.xlu0 %v326, 28
    %v340 = vpop.permute.xlu0 %339
    %341 = vrot.lane.b32.xlu0 %v328, 28
    %v342 = vpop.permute.xlu0 %341
    %343 = vrot.lane.b32.xlu0 %v330, 28
    %v344 = vpop.permute.xlu0 %343
    %vm352 = vcmask 31744
    %v353 = vsel %vm352, %v77, %v110
    %v354 = vsel %vm352, %v78, %v112
    %v355 = vsel %vm352, %v79, %v114
    %v356 = vsel %vm352, %v80, %v116
    %v357 = vsel %vm352, %v81, %v118
    %v358 = vsel %vm352, %v82, %v120
    %v359 = vsel %vm352, %v83, %v122
    %vm360 = vcmask 64512
    %v361 = vsel %vm360, %v353, %v147
    %v362 = vsel %vm360, %v354, %v149
    %v363 = vsel %vm360, %v355, %v151
    %v364 = vsel %vm360, %v356, %v153
    %v365 = vsel %vm360, %v357, %v155
    %v366 = vsel %vm360, %v358, %v157
    %v367 = vsel %vm360, %v359, %v159
    %vm368 = vcmask 97280
    %v369 = vsel %vm368, %v361, %v184
    %v370 = vsel %vm368, %v362, %v186
    %v371 = vsel %vm368, %v363, %v188
    %v372 = vsel %vm368, %v364, %v190
    %v373 = vsel %vm368, %v365, %v192
    %v374 = vsel %vm368, %v366, %v194
    %v375 = vsel %vm368, %v367, %v196
    %vm376 = vcmask 130048
    %v377 = vsel %vm376, %v369, %v221
    %v378 = vsel %vm376, %v370, %v223
    %v379 = vsel %vm376, %v371, %v225
    %v380 = vsel %vm376, %v372, %v227
    %v381 = vsel %vm376, %v373, %v229
    %v382 = vsel %vm376, %v374, %v231
    %v383 = vsel %vm376, %v375, %v233
    %vm384 = vcmask 162816
    %v385 = vsel %vm384, %v377, %v258
    %v386 = vsel %vm384, %v378, %v260
    %v387 = vsel %vm384, %v379, %v262
    %v388 = vsel %vm384, %v380, %v264
    %v389 = vsel %vm384, %v381, %v266
    %v390 = vsel %vm384, %v382, %v268
    %v391 = vsel %vm384, %v383, %v270
    %vm392 = vcmask 195584
    %v393 = vsel %vm392, %v385, %v295
    %v394 = vsel %vm392, %v386, %v297
    %v395 = vsel %vm392, %v387, %v299
    %v396 = vsel %vm392, %v388, %v301
    %v397 = vsel %vm392, %v389, %v303
    %v398 = vsel %vm392, %v390, %v305
    %v399 = vsel %vm392, %v391, %v307
    %vm400 = vcmask 228352
    %v401 = vsel %vm400, %v393, %v332
    %v402 = vsel %vm400, %v394, %v334
    %v403 = vsel %vm400, %v395, %v336
    %v404 = vsel %vm400, %v396, %v338
    %v405 = vsel %vm400, %v397, %v340
    %v406 = vsel %vm400, %v398, %v342
    %v407 = vsel %vm400, %v399, %v344
    %v408 = vld [vmem:[%s1] sm:$0xff]
    %v409 = vld [vmem:[%s1 + $0x8] sm:$0xff]
    %v410 = vld [vmem:[%s1 + $0x10] sm:$0xff]
    %v411 = vld [vmem:[%s1 + $0x18] sm:$0xff]
    %v412 = vld [vmem:[%s2] sm:$0x1]
    %v414 = vperm.slane %v412, 0
    %vm416 = vcmask 261120
    %v418 = vsel %vm416, %v401, 0
    %v421 = vsel %vm416, %v402, 0
    %v424 = vsel %vm416, %v403, 0
    %v427 = vsel %vm416, %v404, 0
    %v430 = vsel %vm416, %v405, 0
    %v433 = vsel %vm416, %v406, 0
    %v436 = vsel %vm416, %v407, 0
    %438 = vmatpush.msra.mxu0 0.0
    %439 = vmatpush.msra.mxu0 0.0
    %440 = vmatpush.msra.mxu0 0.0
    %441 = vmatpush.msra.mxu0 0.0
    %442 = vmatpush.msra.mxu0 0.0
    %443 = vmatpush.msra.mxu0 0.0
    %444 = vmatpush.msra.mxu0 0.0
    %445 = vmatpush.msra.mxu0 0.0
    %446 = vmatpush.msra.mxu0 0.0
    %447 = vmatpush.msra.mxu0 0.0
    %448 = vmatpush.msra.mxu0 0.0
    %449 = vmatpush.msra.mxu0 0.0
    %450 = vmatpush.msra.mxu0 %v411
    %451 = vmatpush.msra.mxu0 %v410
    %452 = vmatpush.msra.mxu0 %v409
    %453 = vmatpush.msra.mxu0 %v408
    %454 = vmatmul.f32.gmra.mxu0 %v418
    %v455 = vpop.f32.mrf.mxu0
    %v456 = vadd.f32 %v414, %v455
    %457 = vmatmul.f32.gmra.mxu0 %v421
    %v458 = vpop.f32.mrf.mxu0
    %v459 = vadd.f32 %v414, %v458
    %460 = vmatmul.f32.gmra.mxu0 %v424
    %v461 = vpop.f32.mrf.mxu0
    %v462 = vadd.f32 %v414, %v461
    %463 = vmatmul.f32.gmra.mxu0 %v427
    %v464 = vpop.f32.mrf.mxu0
    %v465 = vadd.f32 %v414, %v464
    %466 = vmatmul.f32.gmra.mxu0 %v430
    %v467 = vpop.f32.mrf.mxu0
    %v468 = vadd.f32 %v414, %v467
    %469 = vmatmul.f32.gmra.mxu0 %v433
    %v470 = vpop.f32.mrf.mxu0
    %v471 = vadd.f32 %v414, %v470
    %472 = vmatmul.f32.gmra.mxu0 %v436
    %v473 = vpop.f32.mrf.mxu0
    %v474 = vadd.f32 %v414, %v473
    %475 = vdwg.mxu0
    %v483 = vrot.slane %v456, 1
    %v484 = vrot.slane %v459, 1
    %v485 = vsel %vm93, %v483, %v484
    %v486 = vrot.slane %v462, 1
    %v487 = vsel %vm93, %v484, %v486
    %v488 = vrot.slane %v465, 1
    %v489 = vsel %vm93, %v486, %v488
    %v490 = vrot.slane %v468, 1
    %v491 = vsel %vm93, %v488, %v490
    %v492 = vrot.slane %v471, 1
    %v493 = vsel %vm93, %v490, %v492
    %v494 = vrot.slane %v474, 1
    %v495 = vsel %vm93, %v492, %v494
    %v503 = vmax.f32 %v456, %v485
    %v504 = vmax.f32 %v459, %v487
    %v505 = vmax.f32 %v462, %v489
    %v506 = vmax.f32 %v465, %v491
    %v507 = vmax.f32 %v468, %v493
    %v508 = vmax.f32 %v471, %v495
    %v509 = vmax.f32 %v474, %v494
    %v510 = vld [vmem:[%s7] sm:$0xff]
    %v511 = vld [vmem:[%s7 + $0x8] sm:$0xff]
    %v512 = vld [vmem:[%s7 + $0x10] sm:$0xff]
    %v513 = vld [vmem:[%s7 + $0x18] sm:$0xff]
    %v514 = vld [vmem:[%s7 + $0x20] sm:$0xff]
    %v515 = vld [vmem:[%s7 + $0x28] sm:$0xff]
    %v516 = vld [vmem:[%s7 + $0x30] sm:$0xff]
    %v517 = vld [vmem:[%s7 + $0x38] sm:$0xff]
    %vm518 = vcmask 449536
    %v520 = vsel %vm518, %v510, 0
    %v523 = vsel %vm518, %v511, 0
    %v526 = vsel %vm518, %v512, 0
    %v529 = vsel %vm518, %v513, 0
    %v532 = vsel %vm518, %v514, 0
    %v535 = vsel %vm518, %v515, 0
    %v538 = vsel %vm518, %v516, 0
    %v541 = vsel %vm518, %v517, 0
    %v544 = vsel %vm93, %v509, 0
    %546 = vmatpush.msra.mxu0 0.0
    %547 = vmatpush.msra.mxu0 0.0
    %548 = vmatpush.msra.mxu0 0.0
    %549 = vmatpush.msra.mxu0 0.0
    %550 = vmatpush.msra.mxu0 0.0
    %551 = vmatpush.msra.mxu0 0.0
    %552 = vmatpush.msra.mxu0 0.0
    %553 = vmatpush.msra.mxu0 0.0
    %554 = vmatpush.msra.mxu0 0.0
    %555 = vmatpush.msra.mxu0 %v544
    %556 = vmatpush.msra.mxu0 %v508
    %557 = vmatpush.msra.mxu0 %v507
    %558 = vmatpush.msra.mxu0 %v506
    %559 = vmatpush.msra.mxu0 %v505
    %560 = vmatpush.msra.mxu0 %v504
    %561 = vmatpush.msra.mxu0 %v503
    %562 = vmatmul.f32.gmra.mxu0 %v520
    %v563 = vpop.f32.mrf.mxu0
    %v564 = vadd.f32 0.0, %v563
    %565 = vmatmul.f32.gmra.mxu0 %v523
    %v566 = vpop.f32.mrf.mxu0
    %v567 = vadd.f32 0.0, %v566
    %568 = vmatmul.f32.gmra.mxu0 %v526
    %v569 = vpop.f32.mrf.mxu0
    %v570 = vadd.f32 0.0, %v569
    %571 = vmatmul.f32.gmra.mxu0 %v529
    %v572 = vpop.f32.mrf.mxu0
    %v573 = vadd.f32 0.0, %v572
    %574 = vmatmul.f32.gmra.mxu0 %v532
    %v575 = vpop.f32.mrf.mxu0
    %v576 = vadd.f32 0.0, %v575
    %577 = vmatmul.f32.gmra.mxu0 %v535
    %v578 = vpop.f32.mrf.mxu0
    %v579 = vadd.f32 0.0, %v578
    %580 = vmatmul.f32.gmra.mxu0 %v538
    %v581 = vpop.f32.mrf.mxu0
    %v582 = vadd.f32 0.0, %v581
    %583 = vmatmul.f32.gmra.mxu0 %v541
    %v584 = vpop.f32.mrf.mxu0
    %v585 = vadd.f32 0.0, %v584
    %586 = vdwg.mxu0
    %v587 = vmax.f32 %v564, 0.0
    %v588 = vmax.f32 %v567, 0.0
    %v589 = vmax.f32 %v570, 0.0
    %v590 = vmax.f32 %v573, 0.0
    %v591 = vmax.f32 %v576, 0.0
    %v592 = vmax.f32 %v579, 0.0
    %v593 = vmax.f32 %v582, 0.0
    %v594 = vmax.f32 %v585, 0.0
    %v603 = vrot.slane %v587, 1
    %v604 = vrot.slane %v588, 1
    %v605 = vsel %vm93, %v603, %v604
    %v606 = vrot.slane %v589, 1
    %v607 = vsel %vm93, %v604, %v606
    %v608 = vrot.slane %v590, 1
    %v609 = vsel %vm93, %v606, %v608
    %v610 = vrot.slane %v591, 1
    %v611 = vsel %vm93, %v608, %v610
    %v612 = vrot.slane %v592, 1
    %v613 = vsel %vm93, %v610, %v612
    %v614 = vrot.slane %v593, 1
    %v615 = vsel %vm93, %v612, %v614
    %v616 = vrot.slane %v594, 1
    %v617 = vsel %vm93, %v614, %v616
    %618 = vrot.lane.b32.xlu0 %v605, 8
    %v619 = vpop.permute.xlu0 %618
    %620 = vrot.lane.b32.xlu0 %v607, 8
    %v621 = vpop.permute.xlu0 %620
    %622 = vrot.lane.b32.xlu0 %v609, 8
    %v623 = vpop.permute.xlu0 %622
    %624 = vrot.lane.b32.xlu0 %v611, 8
    %v625 = vpop.permute.xlu0 %624
    %626 = vrot.lane.b32.xlu0 %v613, 8
    %v627 = vpop.permute.xlu0 %626
    %628 = vrot.lane.b32.xlu0 %v615, 8
    %v629 = vpop.permute.xlu0 %628
    %630 = vrot.lane.b32.xlu0 %v617, 8
    %v631 = vpop.permute.xlu0 %630
    %v639 = vrot.slane %v587, 2
    %v640 = vrot.slane %v588, 2
    %v641 = vsel %vm130, %v639, %v640
    %v642 = vrot.slane %v589, 2
    %v643 = vsel %vm130, %v640, %v642
    %v644 = vrot.slane %v590, 2
    %v645 = vsel %vm130, %v642, %v644
    %v646 = vrot.slane %v591, 2
    %v647 = vsel %vm130, %v644, %v646
    %v648 = vrot.slane %v592, 2
    %v649 = vsel %vm130, %v646, %v648
    %v650 = vrot.slane %v593, 2
    %v651 = vsel %vm130, %v648, %v650
    %v652 = vrot.slane %v594, 2
    %v653 = vsel %vm130, %v650, %v652
    %654 = vrot.lane.b32.xlu0 %v641, 16
    %v655 = vpop.permute.xlu0 %654
    %656 = vrot.lane.b32.xlu0 %v643, 16
    %v657 = vpop.permute.xlu0 %656
    %658 = vrot.lane.b32.xlu0 %v645, 16
    %v659 = vpop.permute.xlu0 %658
    %660 = vrot.lane.b32.xlu0 %v647, 16
    %v661 = vpop.permute.xlu0 %660
    %662 = vrot.lane.b32.xlu0 %v649, 16
    %v663 = vpop.permute.xlu0 %662
    %664 = vrot.lane.b32.xlu0 %v651, 16
    %v665 = vpop.permute.xlu0 %664
    %666 = vrot.lane.b32.xlu0 %v653, 16
    %v667 = vpop.permute.xlu0 %666
    %v675 = vrot.slane %v587, 3
    %v676 = vrot.slane %v588, 3
    %v677 = vsel %vm167, %v675, %v676
    %v678 = vrot.slane %v589, 3
    %v679 = vsel %vm167, %v676, %v678
    %v680 = vrot.slane %v590, 3
    %v681 = vsel %vm167, %v678, %v680
    %v682 = vrot.slane %v591, 3
    %v683 = vsel %vm167, %v680, %v682
    %v684 = vrot.slane %v592, 3
    %v685 = vsel %vm167, %v682, %v684
    %v686 = vrot.slane %v593, 3
    %v687 = vsel %vm167, %v684, %v686
    %v688 = vrot.slane %v594, 3
    %v689 = vsel %vm167, %v686, %v688
    %690 = vrot.lane.b32.xlu0 %v677, 24
    %v691 = vpop.permute.xlu0 %690
    %692 = vrot.lane.b32.xlu0 %v679, 24
    %v693 = vpop.permute.xlu0 %692
    %694 = vrot.lane.b32.xlu0 %v681, 24
    %v695 = vpop.permute.xlu0 %694
    %696 = vrot.lane.b32.xlu0 %v683, 24
    %v697 = vpop.permute.xlu0 %696
    %698 = vrot.lane.b32.xlu0 %v685, 24
    %v699 = vpop.permute.xlu0 %698
    %700 = vrot.lane.b32.xlu0 %v687, 24
    %v701 = vpop.permute.xlu0 %700
    %702 = vrot.lane.b32.xlu0 %v689, 24
    %v703 = vpop.permute.xlu0 %702
    %v711 = vrot.slane %v587, 4
    %v712 = vrot.slane %v588, 4
    %v713 = vsel %vm204, %v711, %v712
    %v714 = vrot.slane %v589, 4
    %v715 = vsel %vm204, %v712, %v714
    %v716 = vrot.slane %v590, 4
    %v717 = vsel %vm204, %v714, %v716
    %v718 = vrot.slane %v591, 4
    %v719 = vsel %vm204, %v716, %v718
    %v720 = vrot.slane %v592, 4
    %v721 = vsel %vm204, %v718, %v720
    %v722 = vrot.slane %v593, 4
    %v723 = vsel %vm204, %v720, %v722
    %v724 = vrot.slane %v594, 4
    %v725 = vsel %vm204, %v722, %v724
    %726 = vrot.lane.b32.xlu0 %v713, 32
    %v727 = vpop.permute.xlu0 %726
    %728 = vrot.lane.b32.xlu0 %v715, 32
    %v729 = vpop.permute.xlu0 %728
    %730 = vrot.lane.b32.xlu0 %v717, 32
    %v731 = vpop.permute.xlu0 %730
    %732 = vrot.lane.b32.xlu0 %v719, 32
    %v733 = vpop.permute.xlu0 %732
    %734 = vrot.lane.b32.xlu0 %v721, 32
    %v735 = vpop.permute.xlu0 %734
    %736 = vrot.lane.b32.xlu0 %v723, 32
    %v737 = vpop.permute.xlu0 %736
    %738 = vrot.lane.b32.xlu0 %v725, 32
    %v739 = vpop.permute.xlu0 %738
    %v747 = vrot.slane %v587, 5
    %v748 = vrot.slane %v588, 5
    %v749 = vsel %vm241, %v747, %v748
    %v750 = vrot.slane %v589, 5
    %v751 = vsel %vm241, %v748, %v750
    %v752 = vrot.slane %v590, 5
    %v753 = vsel %vm241, %v750, %v752
    %v754 = vrot.slane %v591, 5
    %v755 = vsel %vm241, %v752, %v754
    %v756 = vrot.slane %v592, 5
    %v757 = vsel %vm241, %v754, %v756
    %v758 = vrot.slane %v593, 5
    %v759 = vsel %vm241, %v756, %v758
    %v760 = vrot.slane %v594, 5
    %v761 = vsel %vm241, %v758, %v760
    %762 = vrot.lane.b32.xlu0 %v749, 40
    %v763 = vpop.permute.xlu0 %762
    %764 = vrot.lane.b32.xlu0 %v751, 40
    %v765 = vpop.permute.xlu0 %764
    %766 = vrot.lane.b32.xlu0 %v753, 40
    %v767 = vpop.permute.xlu0 %766
    %768 = vrot.lane.b32.xlu0 %v755, 40
    %v769 = vpop.permute.xlu0 %768
    %770 = vrot.lane.b32.xlu0 %v757, 40
    %v771 = vpop.permute.xlu0 %770
    %772 = vrot.lane.b32.xlu0 %v759, 40
    %v773 = vpop.permute.xlu0 %772
    %774 = vrot.lane.b32.xlu0 %v761, 40
    %v775 = vpop.permute.xlu0 %774
    %v783 = vrot.slane %v587, 6
    %v784 = vrot.slane %v588, 6
    %v785 = vsel %vm278, %v783, %v784
    %v786 = vrot.slane %v589, 6
    %v787 = vsel %vm278, %v784, %v786
    %v788 = vrot.slane %v590, 6
    %v789 = vsel %vm278, %v786, %v788
    %v790 = vrot.slane %v591, 6
    %v791 = vsel %vm278, %v788, %v790
    %v792 = vrot.slane %v592, 6
    %v793 = vsel %vm278, %v790, %v792
    %v794 = vrot.slane %v593, 6
    %v795 = vsel %vm278, %v792, %v794
    %v796 = vrot.slane %v594, 6
    %v797 = vsel %vm278, %v794, %v796
    %798 = vrot.lane.b32.xlu0 %v785, 48
    %v799 = vpop.permute.xlu0 %798
    %800 = vrot.lane.b32.xlu0 %v787, 48
    %v801 = vpop.permute.xlu0 %800
    %802 = vrot.lane.b32.xlu0 %v789, 48
    %v803 = vpop.permute.xlu0 %802
    %804 = vrot.lane.b32.xlu0 %v791, 48
    %v805 = vpop.permute.xlu0 %804
    %806 = vrot.lane.b32.xlu0 %v793, 48
    %v807 = vpop.permute.xlu0 %806
    %808 = vrot.lane.b32.xlu0 %v795, 48
    %v809 = vpop.permute.xlu0 %808
    %810 = vrot.lane.b32.xlu0 %v797, 48
    %v811 = vpop.permute.xlu0 %810
    %v819 = vrot.slane %v587, 7
    %v820 = vrot.slane %v588, 7
    %v821 = vsel %vm315, %v819, %v820
    %v822 = vrot.slane %v589, 7
    %v823 = vsel %vm315, %v820, %v822
    %v824 = vrot.slane %v590, 7
    %v825 = vsel %vm315, %v822, %v824
    %v826 = vrot.slane %v591, 7
    %v827 = vsel %vm315, %v824, %v826
    %v828 = vrot.slane %v592, 7
    %v829 = vsel %vm315, %v826, %v828
    %v830 = vrot.slane %v593, 7
    %v831 = vsel %vm315, %v828, %v830
    %v832 = vrot.slane %v594, 7
    %v833 = vsel %vm315, %v830, %v832
    %834 = vrot.lane.b32.xlu0 %v821, 56
    %v835 = vpop.permute.xlu0 %834
    %836 = vrot.lane.b32.xlu0 %v823, 56
    %v837 = vpop.permute.xlu0 %836
    %838 = vrot.lane.b32.xlu0 %v825, 56
    %v839 = vpop.permute.xlu0 %838
    %840 = vrot.lane.b32.xlu0 %v827, 56
    %v841 = vpop.permute.xlu0 %840
    %842 = vrot.lane.b32.xlu0 %v829, 56
    %v843 = vpop.permute.xlu0 %842
    %844 = vrot.lane.b32.xlu0 %v831, 56
    %v845 = vpop.permute.xlu0 %844
    %846 = vrot.lane.b32.xlu0 %v833, 56
    %v847 = vpop.permute.xlu0 %846
    %v855 = vsel %vm360, %v587, %v619
    %v856 = vsel %vm360, %v588, %v621
    %v857 = vsel %vm360, %v589, %v623
    %v858 = vsel %vm360, %v590, %v625
    %v859 = vsel %vm360, %v591, %v627
    %v860 = vsel %vm360, %v592, %v629
    %v861 = vsel %vm360, %v593, %v631
    %v862 = vsel %vm376, %v855, %v655
    %v863 = vsel %vm376, %v856, %v657
    %v864 = vsel %vm376, %v857, %v659
    %v865 = vsel %vm376, %v858, %v661
    %v866 = vsel %vm376, %v859, %v663
    %v867 = vsel %vm376, %v860, %v665
    %v868 = vsel %vm376, %v861, %v667
    %v869 = vsel %vm392, %v862, %v691
    %v870 = vsel %vm392, %v863, %v693
    %v871 = vsel %vm392, %v864, %v695
    %v872 = vsel %vm392, %v865, %v697
    %v873 = vsel %vm392, %v866, %v699
    %v874 = vsel %vm392, %v867, %v701
    %v875 = vsel %vm392, %v868, %v703
    %v876 = vsel %vm416, %v869, %v727
    %v877 = vsel %vm416, %v870, %v729
    %v878 = vsel %vm416, %v871, %v731
    %v879 = vsel %vm416, %v872, %v733
    %v880 = vsel %vm416, %v873, %v735
    %v881 = vsel %vm416, %v874, %v737
    %v882 = vsel %vm416, %v875, %v739
    %vm883 = vcmask 326656
    %v884 = vsel %vm883, %v876, %v763
    %v885 = vsel %vm883, %v877, %v765
    %v886 = vsel %vm883, %v878, %v767
    %v887 = vsel %vm883, %v879, %v769
    %v888 = vsel %vm883, %v880, %v771
    %v889 = vsel %vm883, %v881, %v773
    %v890 = vsel %vm883, %v882, %v775
    %vm891 = vcmask 392192
    %v892 = vsel %vm891, %v884, %v799
    %v893 = vsel %vm891, %v885, %v801
    %v894 = vsel %vm891, %v886, %v803
    %v895 = vsel %vm891, %v887, %v805
    %v896 = vsel %vm891, %v888, %v807
    %v897 = vsel %vm891, %v889, %v809
    %v898 = vsel %vm891, %v890, %v811
    %vm899 = vcmask 457728
    %v900 = vsel %vm899, %v892, %v835
    %v901 = vsel %vm899, %v893, %v837
    %v902 = vsel %vm899, %v894, %v839
    %v903 = vsel %vm899, %v895, %v841
    %v904 = vsel %vm899, %v896, %v843
    %v905 = vsel %vm899, %v897, %v845
    %v906 = vsel %vm899, %v898, %v847
    %v907 = vld [vmem:[%s3] sm:$0xff]
    %v908 = vld [vmem:[%s3 + $0x8] sm:$0xff]
    %v909 = vld [vmem:[%s3 + $0x10] sm:$0xff]
    %v910 = vld [vmem:[%s3 + $0x18] sm:$0xff]
    %v911 = vld [vmem:[%s3 + $0x20] sm:$0xff]
    %v912 = vld [vmem:[%s3 + $0x28] sm:$0xff]
    %v913 = vld [vmem:[%s3 + $0x30] sm:$0xff]
    %v914 = vld [vmem:[%s3 + $0x38] sm:$0xff]
    %v915 = vld [vmem:[%s4] sm:$0x1]
    %v917 = vperm.slane %v915, 0
    %vm919 = vcmask 523264
    %v921 = vsel %vm919, %v900, 0
    %v924 = vsel %vm919, %v901, 0
    %v927 = vsel %vm919, %v902, 0
    %v930 = vsel %vm919, %v903, 0
    %v933 = vsel %vm919, %v904, 0
    %v936 = vsel %vm919, %v905, 0
    %v939 = vsel %vm919, %v906, 0
    %941 = vmatpush.msra.mxu0 0.0
    %942 = vmatpush.msra.mxu0 0.0
    %943 = vmatpush.msra.mxu0 0.0
    %944 = vmatpush.msra.mxu0 0.0
    %945 = vmatpush.msra.mxu0 0.0
    %946 = vmatpush.msra.mxu0 0.0
    %947 = vmatpush.msra.mxu0 0.0
    %948 = vmatpush.msra.mxu0 0.0
    %949 = vmatpush.msra.mxu0 %v914
    %950 = vmatpush.msra.mxu0 %v913
    %951 = vmatpush.msra.mxu0 %v912
    %952 = vmatpush.msra.mxu0 %v911
    %953 = vmatpush.msra.mxu0 %v910
    %954 = vmatpush.msra.mxu0 %v909
    %955 = vmatpush.msra.mxu0 %v908
    %956 = vmatpush.msra.mxu0 %v907
    %957 = vmatmul.f32.gmra.mxu0 %v921
    %v958 = vpop.f32.mrf.mxu0
    %v959 = vadd.f32 %v917, %v958
    %960 = vmatmul.f32.gmra.mxu0 %v924
    %v961 = vpop.f32.mrf.mxu0
    %v962 = vadd.f32 %v917, %v961
    %963 = vmatmul.f32.gmra.mxu0 %v927
    %v964 = vpop.f32.mrf.mxu0
    %v965 = vadd.f32 %v917, %v964
    %966 = vmatmul.f32.gmra.mxu0 %v930
    %v967 = vpop.f32.mrf.mxu0
    %v968 = vadd.f32 %v917, %v967
    %969 = vmatmul.f32.gmra.mxu0 %v933
    %v970 = vpop.f32.mrf.mxu0
    %v971 = vadd.f32 %v917, %v970
    %972 = vmatmul.f32.gmra.mxu0 %v936
    %v973 = vpop.f32.mrf.mxu0
    %v974 = vadd.f32 %v917, %v973
    %975 = vmatmul.f32.gmra.mxu0 %v939
    %v976 = vpop.f32.mrf.mxu0
    %v977 = vadd.f32 %v917, %v976
    %978 = vdwg.mxu0
    %v986 = vrot.slane %v959, 1
    %v987 = vrot.slane %v962, 1
    %v988 = vsel %vm93, %v986, %v987
    %v989 = vrot.slane %v965, 1
    %v990 = vsel %vm93, %v987, %v989
    %v991 = vrot.slane %v968, 1
    %v992 = vsel %vm93, %v989, %v991
    %v993 = vrot.slane %v971, 1
    %v994 = vsel %vm93, %v991, %v993
    %v995 = vrot.slane %v974, 1
    %v996 = vsel %vm93, %v993, %v995
    %v997 = vrot.slane %v977, 1
    %v998 = vsel %vm93, %v995, %v997
    %v1006 = vmax.f32 %v959, %v988
    %v1007 = vmax.f32 %v962, %v990
    %v1008 = vmax.f32 %v965, %v992
    %v1009 = vmax.f32 %v968, %v994
    %v1010 = vmax.f32 %v971, %v996
    %v1011 = vmax.f32 %v974, %v998
    %v1012 = vmax.f32 %v977, %v997
    %v1013 = vld [vmem:[%s8] sm:$0xff]
    %v1014 = vld [vmem:[%s8 + $0x8] sm:$0xff]
    %v1015 = vld [vmem:[%s8 + $0x10] sm:$0xff]
    %v1016 = vld [vmem:[%s8 + $0x18] sm:$0xff]
    %v1017 = vld [vmem:[%s8 + $0x20] sm:$0xff]
    %v1018 = vld [vmem:[%s8 + $0x28] sm:$0xff]
    %v1019 = vld [vmem:[%s8 + $0x30] sm:$0xff]
    %v1020 = vld [vmem:[%s8 + $0x38] sm:$0xff]
    %v1022 = vsel %vm518, %v1013, 0
    %v1025 = vsel %vm518, %v1014, 0
    %v1028 = vsel %vm518, %v1015, 0
    %v1031 = vsel %vm518, %v1016, 0
    %v1034 = vsel %vm518, %v1017, 0
    %v1037 = vsel %vm518, %v1018, 0
    %v1040 = vsel %vm518, %v1019, 0
    %v1043 = vsel %vm518, %v1020, 0
    %v1046 = vsel %vm93, %v1012, 0
    %1048 = vmatpush.msra.mxu0 0.0
    %1049 = vmatpush.msra.mxu0 0.0
    %1050 = vmatpush.msra.mxu0 0.0
    %1051 = vmatpush.msra.mxu0 0.0
    %1052 = vmatpush.msra.mxu0 0.0
    %1053 = vmatpush.msra.mxu0 0.0
    %1054 = vmatpush.msra.mxu0 0.0
    %1055 = vmatpush.msra.mxu0 0.0
    %1056 = vmatpush.msra.mxu0 0.0
    %1057 = vmatpush.msra.mxu0 %v1046
    %1058 = vmatpush.msra.mxu0 %v1011
    %1059 = vmatpush.msra.mxu0 %v1010
    %1060 = vmatpush.msra.mxu0 %v1009
    %1061 = vmatpush.msra.mxu0 %v1008
    %1062 = vmatpush.msra.mxu0 %v1007
    %1063 = vmatpush.msra.mxu0 %v1006
    %1064 = vmatmul.f32.gmra.mxu0 %v1022
    %v1065 = vpop.f32.mrf.mxu0
    %v1066 = vadd.f32 0.0, %v1065
    %1067 = vmatmul.f32.gmra.mxu0 %v1025
    %v1068 = vpop.f32.mrf.mxu0
    %v1069 = vadd.f32 0.0, %v1068
    %1070 = vmatmul.f32.gmra.mxu0 %v1028
    %v1071 = vpop.f32.mrf.mxu0
    %v1072 = vadd.f32 0.0, %v1071
    %1073 = vmatmul.f32.gmra.mxu0 %v1031
    %v1074 = vpop.f32.mrf.mxu0
    %v1075 = vadd.f32 0.0, %v1074
    %1076 = vmatmul.f32.gmra.mxu0 %v1034
    %v1077 = vpop.f32.mrf.mxu0
    %v1078 = vadd.f32 0.0, %v1077
    %1079 = vmatmul.f32.gmra.mxu0 %v1037
    %v1080 = vpop.f32.mrf.mxu0
    %v1081 = vadd.f32 0.0, %v1080
    %1082 = vmatmul.f32.gmra.mxu0 %v1040
    %v1083 = vpop.f32.mrf.mxu0
    %v1084 = vadd.f32 0.0, %v1083
    %1085 = vmatmul.f32.gmra.mxu0 %v1043
    %v1086 = vpop.f32.mrf.mxu0
    %v1087 = vadd.f32 0.0, %v1086
    %1088 = vdwg.mxu0
    %v1089 = vmax.f32 %v1066, 0.0
    %v1090 = vmax.f32 %v1069, 0.0
    %v1091 = vmax.f32 %v1072, 0.0
    %v1092 = vmax.f32 %v1075, 0.0
    %v1093 = vmax.f32 %v1078, 0.0
    %v1094 = vmax.f32 %v1081, 0.0
    %v1095 = vmax.f32 %v1084, 0.0
    %v1096 = vmax.f32 %v1087, 0.0
    %v1105 = vrot.slane %v1089, 1
    %v1106 = vrot.slane %v1090, 1
    %v1107 = vsel %vm93, %v1105, %v1106
    %v1108 = vrot.slane %v1091, 1
    %v1109 = vsel %vm93, %v1106, %v1108
    %v1110 = vrot.slane %v1092, 1
    %v1111 = vsel %vm93, %v1108, %v1110
    %v1112 = vrot.slane %v1093, 1
    %v1113 = vsel %vm93, %v1110, %v1112
    %v1114 = vrot.slane %v1094, 1
    %v1115 = vsel %vm93, %v1112, %v1114
    %v1116 = vrot.slane %v1095, 1
    %v1117 = vsel %vm93, %v1114, %v1116
    %v1118 = vrot.slane %v1096, 1
    %v1119 = vsel %vm93, %v1116, %v1118
    %1120 = vrot.lane.b32.xlu0 %v1107, 16
    %v1121 = vpop.permute.xlu0 %1120
    %1122 = vrot.lane.b32.xlu0 %v1109, 16
    %v1123 = vpop.permute.xlu0 %1122
    %1124 = vrot.lane.b32.xlu0 %v1111, 16
    %v1125 = vpop.permute.xlu0 %1124
    %1126 = vrot.lane.b32.xlu0 %v1113, 16
    %v1127 = vpop.permute.xlu0 %1126
    %1128 = vrot.lane.b32.xlu0 %v1115, 16
    %v1129 = vpop.permute.xlu0 %1128
    %1130 = vrot.lane.b32.xlu0 %v1117, 16
    %v1131 = vpop.permute.xlu0 %1130
    %1132 = vrot.lane.b32.xlu0 %v1119, 16
    %v1133 = vpop.permute.xlu0 %1132
    %v1141 = vrot.slane %v1089, 2
    %v1142 = vrot.slane %v1090, 2
    %v1143 = vsel %vm130, %v1141, %v1142
    %v1144 = vrot.slane %v1091, 2
    %v1145 = vsel %vm130, %v1142, %v1144
    %v1146 = vrot.slane %v1092, 2
    %v1147 = vsel %vm130, %v1144, %v1146
    %v1148 = vrot.slane %v1093, 2
    %v1149 = vsel %vm130, %v1146, %v1148
    %v1150 = vrot.slane %v1094, 2
    %v1151 = vsel %vm130, %v1148, %v1150
    %v1152 = vrot.slane %v1095, 2
    %v1153 = vsel %vm130, %v1150, %v1152
    %v1154 = vrot.slane %v1096, 2
    %v1155 = vsel %vm130, %v1152, %v1154
    %1156 = vrot.lane.b32.xlu0 %v1143, 32
    %v1157 = vpop.permute.xlu0 %1156
    %1158 = vrot.lane.b32.xlu0 %v1145, 32
    %v1159 = vpop.permute.xlu0 %1158
    %1160 = vrot.lane.b32.xlu0 %v1147, 32
    %v1161 = vpop.permute.xlu0 %1160
    %1162 = vrot.lane.b32.xlu0 %v1149, 32
    %v1163 = vpop.permute.xlu0 %1162
    %1164 = vrot.lane.b32.xlu0 %v1151, 32
    %v1165 = vpop.permute.xlu0 %1164
    %1166 = vrot.lane.b32.xlu0 %v1153, 32
    %v1167 = vpop.permute.xlu0 %1166
    %1168 = vrot.lane.b32.xlu0 %v1155, 32
    %v1169 = vpop.permute.xlu0 %1168
    %v1177 = vrot.slane %v1089, 3
    %v1178 = vrot.slane %v1090, 3
    %v1179 = vsel %vm167, %v1177, %v1178
    %v1180 = vrot.slane %v1091, 3
    %v1181 = vsel %vm167, %v1178, %v1180
    %v1182 = vrot.slane %v1092, 3
    %v1183 = vsel %vm167, %v1180, %v1182
    %v1184 = vrot.slane %v1093, 3
    %v1185 = vsel %vm167, %v1182, %v1184
    %v1186 = vrot.slane %v1094, 3
    %v1187 = vsel %vm167, %v1184, %v1186
    %v1188 = vrot.slane %v1095, 3
    %v1189 = vsel %vm167, %v1186, %v1188
    %v1190 = vrot.slane %v1096, 3
    %v1191 = vsel %vm167, %v1188, %v1190
    %1192 = vrot.lane.b32.xlu0 %v1179, 48
    %v1193 = vpop.permute.xlu0 %1192
    %1194 = vrot.lane.b32.xlu0 %v1181, 48
    %v1195 = vpop.permute.xlu0 %1194
    %1196 = vrot.lane.b32.xlu0 %v1183, 48
    %v1197 = vpop.permute.xlu0 %1196
    %1198 = vrot.lane.b32.xlu0 %v1185, 48
    %v1199 = vpop.permute.xlu0 %1198
    %1200 = vrot.lane.b32.xlu0 %v1187, 48
    %v1201 = vpop.permute.xlu0 %1200
    %1202 = vrot.lane.b32.xlu0 %v1189, 48
    %v1203 = vpop.permute.xlu0 %1202
    %1204 = vrot.lane.b32.xlu0 %v1191, 48
    %v1205 = vpop.permute.xlu0 %1204
    %v1213 = vrot.slane %v1089, 4
    %v1214 = vrot.slane %v1090, 4
    %v1215 = vsel %vm204, %v1213, %v1214
    %v1216 = vrot.slane %v1091, 4
    %v1217 = vsel %vm204, %v1214, %v1216
    %v1218 = vrot.slane %v1092, 4
    %v1219 = vsel %vm204, %v1216, %v1218
    %v1220 = vrot.slane %v1093, 4
    %v1221 = vsel %vm204, %v1218, %v1220
    %v1222 = vrot.slane %v1094, 4
    %v1223 = vsel %vm204, %v1220, %v1222
    %v1224 = vrot.slane %v1095, 4
    %v1225 = vsel %vm204, %v1222, %v1224
    %v1226 = vrot.slane %v1096, 4
    %v1227 = vsel %vm204, %v1224, %v1226
    %1228 = vrot.lane.b32.xlu0 %v1215, 64
    %v1229 = vpop.permute.xlu0 %1228
    %1230 = vrot.lane.b32.xlu0 %v1217, 64
    %v1231 = vpop.permute.xlu0 %1230
    %1232 = vrot.lane.b32.xlu0 %v1219, 64
    %v1233 = vpop.permute.xlu0 %1232
    %1234 = vrot.lane.b32.xlu0 %v1221, 64
    %v1235 = vpop.permute.xlu0 %1234
    %1236 = vrot.lane.b32.xlu0 %v1223, 64
    %v1237 = vpop.permute.xlu0 %1236
    %1238 = vrot.lane.b32.xlu0 %v1225, 64
    %v1239 = vpop.permute.xlu0 %1238
    %1240 = vrot.lane.b32.xlu0 %v1227, 64
    %v1241 = vpop.permute.xlu0 %1240
    %v1249 = vrot.slane %v1089, 5
    %v1250 = vrot.slane %v1090, 5
    %v1251 = vsel %vm241, %v1249, %v1250
    %v1252 = vrot.slane %v1091, 5
    %v1253 = vsel %vm241, %v1250, %v1252
    %v1254 = vrot.slane %v1092, 5
    %v1255 = vsel %vm241, %v1252, %v1254
    %v1256 = vrot.slane %v1093, 5
    %v1257 = vsel %vm241, %v1254, %v1256
    %v1258 = vrot.slane %v1094, 5
    %v1259 = vsel %vm241, %v1256, %v1258
    %v1260 = vrot.slane %v1095, 5
    %v1261 = vsel %vm241, %v1258, %v1260
    %v1262 = vrot.slane %v1096, 5
    %v1263 = vsel %vm241, %v1260, %v1262
    %1264 = vrot.lane.b32.xlu0 %v1251, 80
    %v1265 = vpop.permute.xlu0 %1264
    %1266 = vrot.lane.b32.xlu0 %v1253, 80
    %v1267 = vpop.permute.xlu0 %1266
    %1268 = vrot.lane.b32.xlu0 %v1255, 80
    %v1269 = vpop.permute.xlu0 %1268
    %1270 = vrot.lane.b32.xlu0 %v1257, 80
    %v1271 = vpop.permute.xlu0 %1270
    %1272 = vrot.lane.b32.xlu0 %v1259, 80
    %v1273 = vpop.permute.xlu0 %1272
    %1274 = vrot.lane.b32.xlu0 %v1261, 80
    %v1275 = vpop.permute.xlu0 %1274
    %1276 = vrot.lane.b32.xlu0 %v1263, 80
    %v1277 = vpop.permute.xlu0 %1276
    %v1285 = vrot.slane %v1089, 6
    %v1286 = vrot.slane %v1090, 6
    %v1287 = vsel %vm278, %v1285, %v1286
    %v1288 = vrot.slane %v1091, 6
    %v1289 = vsel %vm278, %v1286, %v1288
    %v1290 = vrot.slane %v1092, 6
    %v1291 = vsel %vm278, %v1288, %v1290
    %v1292 = vrot.slane %v1093, 6
    %v1293 = vsel %vm278, %v1290, %v1292
    %v1294 = vrot.slane %v1094, 6
    %v1295 = vsel %vm278, %v1292, %v1294
    %v1296 = vrot.slane %v1095, 6
    %v1297 = vsel %vm278, %v1294, %v1296
    %v1298 = vrot.slane %v1096, 6
    %v1299 = vsel %vm278, %v1296, %v1298
    %1300 = vrot.lane.b32.xlu0 %v1287, 96
    %v1301 = vpop.permute.xlu0 %1300
    %1302 = vrot.lane.b32.xlu0 %v1289, 96
    %v1303 = vpop.permute.xlu0 %1302
    %1304 = vrot.lane.b32.xlu0 %v1291, 96
    %v1305 = vpop.permute.xlu0 %1304
    %1306 = vrot.lane.b32.xlu0 %v1293, 96
    %v1307 = vpop.permute.xlu0 %1306
    %1308 = vrot.lane.b32.xlu0 %v1295, 96
    %v1309 = vpop.permute.xlu0 %1308
    %1310 = vrot.lane.b32.xlu0 %v1297, 96
    %v1311 = vpop.permute.xlu0 %1310
    %1312 = vrot.lane.b32.xlu0 %v1299, 96
    %v1313 = vpop.permute.xlu0 %1312
    %v1321 = vrot.slane %v1089, 7
    %v1322 = vrot.slane %v1090, 7
    %v1323 = vsel %vm315, %v1321, %v1322
    %v1324 = vrot.slane %v1091, 7
    %v1325 = vsel %vm315, %v1322, %v1324
    %v1326 = vrot.slane %v1092, 7
    %v1327 = vsel %vm315, %v1324, %v1326
    %v1328 = vrot.slane %v1093, 7
    %v1329 = vsel %vm315, %v1326, %v1328
    %v1330 = vrot.slane %v1094, 7
    %v1331 = vsel %vm315, %v1328, %v1330
    %v1332 = vrot.slane %v1095, 7
    %v1333 = vsel %vm315, %v1330, %v1332
    %v1334 = vrot.slane %v1096, 7
    %v1335 = vsel %vm315, %v1332, %v1334
    %1336 = vrot.lane.b32.xlu0 %v1323, 112
    %v1337 = vpop.permute.xlu0 %1336
    %1338 = vrot.lane.b32.xlu0 %v1325, 112
    %v1339 = vpop.permute.xlu0 %1338
    %1340 = vrot.lane.b32.xlu0 %v1327, 112
    %v1341 = vpop.permute.xlu0 %1340
    %1342 = vrot.lane.b32.xlu0 %v1329, 112
    %v1343 = vpop.permute.xlu0 %1342
    %1344 = vrot.lane.b32.xlu0 %v1331, 112
    %v1345 = vpop.permute.xlu0 %1344
    %1346 = vrot.lane.b32.xlu0 %v1333, 112
    %v1347 = vpop.permute.xlu0 %1346
    %1348 = vrot.lane.b32.xlu0 %v1335, 112
    %v1349 = vpop.permute.xlu0 %1348
    %v1357 = vsel %vm376, %v1089, %v1121
    %v1358 = vsel %vm376, %v1090, %v1123
    %v1359 = vsel %vm376, %v1091, %v1125
    %v1360 = vsel %vm376, %v1092, %v1127
    %v1361 = vsel %vm376, %v1093, %v1129
    %v1362 = vsel %vm376, %v1094, %v1131
    %v1363 = vsel %vm376, %v1095, %v1133
    %v1364 = vsel %vm416, %v1357, %v1157
    %v1365 = vsel %vm416, %v1358, %v1159
    %v1366 = vsel %vm416, %v1359, %v1161
    %v1367 = vsel %vm416, %v1360, %v1163
    %v1368 = vsel %vm416, %v1361, %v1165
    %v1369 = vsel %vm416, %v1362, %v1167
    %v1370 = vsel %vm416, %v1363, %v1169
    %v1371 = vsel %vm891, %v1364, %v1193
    %v1372 = vsel %vm891, %v1365, %v1195
    %v1373 = vsel %vm891, %v1366, %v1197
    %v1374 = vsel %vm891, %v1367, %v1199
    %v1375 = vsel %vm891, %v1368, %v1201
    %v1376 = vsel %vm891, %v1369, %v1203
    %v1377 = vsel %vm891, %v1370, %v1205
    %v1378 = vsel %vm919, %v1371, %v1229
    %v1379 = vsel %vm919, %v1372, %v1231
    %v1380 = vsel %vm919, %v1373, %v1233
    %v1381 = vsel %vm919, %v1374, %v1235
    %v1382 = vsel %vm919, %v1375, %v1237
    %v1383 = vsel %vm919, %v1376, %v1239
    %v1384 = vsel %vm919, %v1377, %v1241
    %vm1385 = vcmask 654336
    %v1386 = vsel %vm1385, %v1378, %v1265
    %v1387 = vsel %vm1385, %v1379, %v1267
    %v1388 = vsel %vm1385, %v1380, %v1269
    %v1389 = vsel %vm1385, %v1381, %v1271
    %v1390 = vsel %vm1385, %v1382, %v1273
    %v1391 = vsel %vm1385, %v1383, %v1275
    %v1392 = vsel %vm1385, %v1384, %v1277
    %vm1393 = vcmask 785408
    %v1394 = vsel %vm1393, %v1386, %v1301
    %v1395 = vsel %vm1393, %v1387, %v1303
    %v1396 = vsel %vm1393, %v1388, %v1305
    %v1397 = vsel %vm1393, %v1389, %v1307
    %v1398 = vsel %vm1393, %v1390, %v1309
    %v1399 = vsel %vm1393, %v1391, %v1311
    %v1400 = vsel %vm1393, %v1392, %v1313
    %vm1401 = vcmask 916480
    %v1402 = vsel %vm1401, %v1394, %v1337
    %v1403 = vsel %vm1401, %v1395, %v1339
    %v1404 = vsel %vm1401, %v1396, %v1341
    %v1405 = vsel %vm1401, %v1397, %v1343
    %v1406 = vsel %vm1401, %v1398, %v1345
    %v1407 = vsel %vm1401, %v1399, %v1347
    %v1408 = vsel %vm1401, %v1400, %v1349
    %v1409 = vld [vmem:[%s5] sm:$0xff]
    %v1410 = vld [vmem:[%s5 + $0x8] sm:$0xff]
    %v1411 = vld [vmem:[%s5 + $0x10] sm:$0xff]
    %v1412 = vld [vmem:[%s5 + $0x18] sm:$0xff]
    %v1413 = vld [vmem:[%s5 + $0x20] sm:$0xff]
    %v1414 = vld [vmem:[%s5 + $0x28] sm:$0xff]
    %v1415 = vld [vmem:[%s5 + $0x30] sm:$0xff]
    %v1416 = vld [vmem:[%s5 + $0x38] sm:$0xff]
    %v1417 = vld [vmem:[%s5 + $0x40] sm:$0xff]
    %v1418 = vld [vmem:[%s5 + $0x48] sm:$0xff]
    %v1419 = vld [vmem:[%s5 + $0x50] sm:$0xff]
    %v1420 = vld [vmem:[%s5 + $0x58] sm:$0xff]
    %v1421 = vld [vmem:[%s5 + $0x60] sm:$0xff]
    %v1422 = vld [vmem:[%s5 + $0x68] sm:$0xff]
    %v1423 = vld [vmem:[%s5 + $0x70] sm:$0xff]
    %v1424 = vld [vmem:[%s5 + $0x78] sm:$0xff]
    %v1425 = vld [vmem:[%s6] sm:$0x1]
    %v1427 = vperm.slane %v1425, 0
    %1429 = vmatpush.msra.mxu0 %v1424
    %1430 = vmatpush.msra.mxu0 %v1423
    %1431 = vmatpush.msra.mxu0 %v1422
    %1432 = vmatpush.msra.mxu0 %v1421
    %1433 = vmatpush.msra.mxu0 %v1420
    %1434 = vmatpush.msra.mxu0 %v1419
    %1435 = vmatpush.msra.mxu0 %v1418
    %1436 = vmatpush.msra.mxu0 %v1417
    %1437 = vmatpush.msra.mxu0 %v1416
    %1438 = vmatpush.msra.mxu0 %v1415
    %1439 = vmatpush.msra.mxu0 %v1414
    %1440 = vmatpush.msra.mxu0 %v1413
    %1441 = vmatpush.msra.mxu0 %v1412
    %1442 = vmatpush.msra.mxu0 %v1411
    %1443 = vmatpush.msra.mxu0 %v1410
    %1444 = vmatpush.msra.mxu0 %v1409
    %1445 = vmatmul.f32.gmra.mxu0 %v1402
    %v1446 = vpop.f32.mrf.mxu0
    %v1447 = vadd.f32 %v1427, %v1446
    %1448 = vmatmul.f32.gmra.mxu0 %v1403
    %v1449 = vpop.f32.mrf.mxu0
    %v1450 = vadd.f32 %v1427, %v1449
    %1451 = vmatmul.f32.gmra.mxu0 %v1404
    %v1452 = vpop.f32.mrf.mxu0
    %v1453 = vadd.f32 %v1427, %v1452
    %1454 = vmatmul.f32.gmra.mxu0 %v1405
    %v1455 = vpop.f32.mrf.mxu0
    %v1456 = vadd.f32 %v1427, %v1455
    %1457 = vmatmul.f32.gmra.mxu0 %v1406
    %v1458 = vpop.f32.mrf.mxu0
    %v1459 = vadd.f32 %v1427, %v1458
    %1460 = vmatmul.f32.gmra.mxu0 %v1407
    %v1461 = vpop.f32.mrf.mxu0
    %v1462 = vadd.f32 %v1427, %v1461
    %1463 = vmatmul.f32.gmra.mxu0 %v1408
    %v1464 = vpop.f32.mrf.mxu0
    %v1465 = vadd.f32 %v1427, %v1464
    %1466 = vdwg.mxu0
    %v1474 = vrot.slane %v1447, 1
    %v1475 = vrot.slane %v1450, 1
    %v1476 = vsel %vm93, %v1474, %v1475
    %v1477 = vrot.slane %v1453, 1
    %v1478 = vsel %vm93, %v1475, %v1477
    %v1479 = vrot.slane %v1456, 1
    %v1480 = vsel %vm93, %v1477, %v1479
    %v1481 = vrot.slane %v1459, 1
    %v1482 = vsel %vm93, %v1479, %v1481
    %v1483 = vrot.slane %v1462, 1
    %v1484 = vsel %vm93, %v1481, %v1483
    %v1485 = vrot.slane %v1465, 1
    %v1486 = vsel %vm93, %v1483, %v1485
    %v1494 = vmax.f32 %v1447, %v1476
    %v1495 = vmax.f32 %v1450, %v1478
    %v1496 = vmax.f32 %v1453, %v1480
    %v1497 = vmax.f32 %v1456, %v1482
    %v1498 = vmax.f32 %v1459, %v1484
    %v1499 = vmax.f32 %v1462, %v1486
    %v1500 = vmax.f32 %v1465, %v1485
    %v1501 = vld [vmem:[%s9] sm:$0x3f]
    %v1503 = vsel %vm518, %v1501, 0
    %v1506 = vsel %vm93, %v1500, 0
    %1508 = vmatpush.msra.mxu0 0.0
    %1509 = vmatpush.msra.mxu0 0.0
    %1510 = vmatpush.msra.mxu0 0.0
    %1511 = vmatpush.msra.mxu0 0.0
    %1512 = vmatpush.msra.mxu0 0.0
    %1513 = vmatpush.msra.mxu0 0.0
    %1514 = vmatpush.msra.mxu0 0.0
    %1515 = vmatpush.msra.mxu0 0.0
    %1516 = vmatpush.msra.mxu0 0.0
    %1517 = vmatpush.msra.mxu0 %v1506
    %1518 = vmatpush.msra.mxu0 %v1499
    %1519 = vmatpush.msra.mxu0 %v1498
    %1520 = vmatpush.msra.mxu0 %v1497
    %1521 = vmatpush.msra.mxu0 %v1496
    %1522 = vmatpush.msra.mxu0 %v1495
    %1523 = vmatpush.msra.mxu0 %v1494
    %1524 = vmatmul.f32.gmra.mxu0 %v1503
    %v1525 = vpop.f32.mrf.mxu0
    %v1526 = vadd.f32 0.0, %v1525
    %1527 = vdwg.mxu0
    %v1528 = vmax.f32 %v1526, 0.0
    %v1530 = vrot.slane %v1528, 2
    %1531 = vrot.lane.b32.xlu0 %v1530, 32
    %v1532 = vpop.permute.xlu0 %1531
    %v1534 = vrot.slane %v1528, 4
    %1535 = vrot.lane.b32.xlu0 %v1534, 64
    %v1536 = vpop.permute.xlu0 %1535
    %v1538 = vsel %vm416, %v1528, %v1532
    %v1539 = vsel %vm919, %v1538, %v1536
    %v1540 = vld [vmem:[%s10] sm:$0xff]
    %v1541 = vld [vmem:[%s10 + $0x8] sm:$0xff]
    %v1542 = vld [vmem:[%s10 + $0x10] sm:$0xff]
    %v1543 = vld [vmem:[%s10 + $0x18] sm:$0xff]
    %v1544 = vld [vmem:[%s10 + $0x20] sm:$0xff]
    %v1545 = vld [vmem:[%s10 + $0x28] sm:$0xff]
    %v1546 = vld [vmem:[%s10 + $0x30] sm:$0xff]
    %v1547 = vld [vmem:[%s10 + $0x38] sm:$0xff]
    %v1548 = vld [vmem:[%s10 + $0x40] sm:$0xff]
    %v1549 = vld [vmem:[%s10 + $0x48] sm:$0xff]
    %v1550 = vld [vmem:[%s10 + $0x50] sm:$0xff]
    %v1551 = vld [vmem:[%s10 + $0x58] sm:$0xff]
    %v1552 = vld [vmem:[%s10 + $0x60] sm:$0xff]
    %v1553 = vld [vmem:[%s10 + $0x68] sm:$0xff]
    %v1554 = vld [vmem:[%s10 + $0x70] sm:$0xff]
    %v1555 = vld [vmem:[%s10 + $0x78] sm:$0xff]
    %v1556 = vld [vmem:[%s10 + $0x80] sm:$0xff]
    %v1557 = vld [vmem:[%s10 + $0x88] sm:$0xff]
    %v1558 = vld [vmem:[%s10 + $0x90] sm:$0xff]
    %v1559 = vld [vmem:[%s10 + $0x98] sm:$0xff]
    %v1560 = vld [vmem:[%s10 + $0xa0] sm:$0xff]
    %v1561 = vld [vmem:[%s10 + $0xa8] sm:$0xff]
    %v1562 = vld [vmem:[%s10 + $0xb0] sm:$0xff]
    %v1563 = vld [vmem:[%s10 + $0xb8] sm:$0xff]
    %v1564 = vld [vmem:[%s10 + $0xc0] sm:$0xff]
    %v1565 = vld [vmem:[%s10 + $0xc8] sm:$0xff]
    %v1566 = vld [vmem:[%s10 + $0xd0] sm:$0xff]
    %v1567 = vld [vmem:[%s10 + $0xd8] sm:$0xff]
    %v1568 = vld [vmem:[%s10 + $0xe0] sm:$0xff]
    %v1569 = vld [vmem:[%s10 + $0xe8] sm:$0xff]
    %v1570 = vld [vmem:[%s10 + $0xf0] sm:$0xff]
    %v1571 = vld [vmem:[%s10 + $0xf8] sm:$0xff]
    %v1572 = vld [vmem:[%s10 + $0x100] sm:$0xff]
    %v1573 = vld [vmem:[%s10 + $0x108] sm:$0xff]
    %v1574 = vld [vmem:[%s10 + $0x110] sm:$0xff]
    %v1575 = vld [vmem:[%s10 + $0x118] sm:$0xff]
    %v1576 = vld [vmem:[%s11] sm:$0x7]
    %v1578 = vperm.slane %v1576, 0
    %v1579 = vperm.slane %v1576, 1
    %v1580 = vperm.slane %v1576, 2
    %v1585 = vsel %vm1393, %v1539, 0
    %1587 = vmatpush.msra.mxu0 0.0
    %1588 = vmatpush.msra.mxu0 0.0
    %1589 = vmatpush.msra.mxu0 0.0
    %1590 = vmatpush.msra.mxu0 0.0
    %1591 = vmatpush.msra.mxu0 %v1573
    %1592 = vmatpush.msra.mxu0 %v1570
    %1593 = vmatpush.msra.mxu0 %v1567
    %1594 = vmatpush.msra.mxu0 %v1564
    %1595 = vmatpush.msra.mxu0 %v1561
    %1596 = vmatpush.msra.mxu0 %v1558
    %1597 = vmatpush.msra.mxu0 %v1555
    %1598 = vmatpush.msra.mxu0 %v1552
    %1599 = vmatpush.msra.mxu0 %v1549
    %1600 = vmatpush.msra.mxu0 %v1546
    %1601 = vmatpush.msra.mxu0 %v1543
    %1602 = vmatpush.msra.mxu0 %v1540
    %1603 = vmatmul.f32.gmra.mxu0 %v1585
    %v1604 = vpop.f32.mrf.mxu0
    %v1605 = vadd.f32 %v1578, %v1604
    %1606 = vdwg.mxu0
    %1607 = vmatpush.msra.mxu0 0.0
    %1608 = vmatpush.msra.mxu0 0.0
    %1609 = vmatpush.msra.mxu0 0.0
    %1610 = vmatpush.msra.mxu0 0.0
    %1611 = vmatpush.msra.mxu0 %v1574
    %1612 = vmatpush.msra.mxu0 %v1571
    %1613 = vmatpush.msra.mxu0 %v1568
    %1614 = vmatpush.msra.mxu0 %v1565
    %1615 = vmatpush.msra.mxu0 %v1562
    %1616 = vmatpush.msra.mxu0 %v1559
    %1617 = vmatpush.msra.mxu0 %v1556
    %1618 = vmatpush.msra.mxu0 %v1553
    %1619 = vmatpush.msra.mxu0 %v1550
    %1620 = vmatpush.msra.mxu0 %v1547
    %1621 = vmatpush.msra.mxu0 %v1544
    %1622 = vmatpush.msra.mxu0 %v1541
    %1623 = vmatmul.f32.gmra.mxu0 %v1585
    %v1624 = vpop.f32.mrf.mxu0
    %v1625 = vadd.f32 %v1579, %v1624
    %1626 = vdwg.mxu0
    %1627 = vmatpush.msra.mxu0 0.0
    %1628 = vmatpush.msra.mxu0 0.0
    %1629 = vmatpush.msra.mxu0 0.0
    %1630 = vmatpush.msra.mxu0 0.0
    %1631 = vmatpush.msra.mxu0 %v1575
    %1632 = vmatpush.msra.mxu0 %v1572
    %1633 = vmatpush.msra.mxu0 %v1569
    %1634 = vmatpush.msra.mxu0 %v1566
    %1635 = vmatpush.msra.mxu0 %v1563
    %1636 = vmatpush.msra.mxu0 %v1560
    %1637 = vmatpush.msra.mxu0 %v1557
    %1638 = vmatpush.msra.mxu0 %v1554
    %1639 = vmatpush.msra.mxu0 %v1551
    %1640 = vmatpush.msra.mxu0 %v1548
    %1641 = vmatpush.msra.mxu0 %v1545
    %1642 = vmatpush.msra.mxu0 %v1542
    %1643 = vmatmul.f32.gmra.mxu0 %v1585
    %v1644 = vpop.f32.mrf.mxu0
    %v1645 = vadd.f32 %v1580, %v1644
    %1646 = vdwg.mxu0
    %v1647 = vxor.u32 %v1605, 2147483648
    %v1648 = vmul.f32 %v1647, 1.442695
    %v1649 = vpow.pop %v1648
    %v1650 = vadd.f32 %v1649, 1.0
    %v1651 = vrcp.pop %v1650
    %v1652 = vmul.f32 %v1650, %v1651
    %v1653 = vsub.f32 1.0, %v1652
    %v1654 = vmul.f32 %v1651, %v1653
    %v1655 = vadd.f32 %v1651, %v1654
    %vm1656 = vweird.f32 %v1650
    %vm1657 = vweird.f32 %v1651
    %vm1658 = vmor %vm1656, %vm1657
    %v1659 = vsel %vm1658, %v1651, %v1655
    %v1660 = vand.u32 2147483647, %v1650
    %vm1661 = vcmp.eq.f32.partialorder %v1660, 8.507059e+37
    %v1662 = vand.u32 %v1650, 2147483648
    %v1663 = vor.u32 1.1754944e-38, %v1662
    %v1664 = vsel %vm1661, %v1663, %v1659
    %v1665 = vmul.f32 1.0, %v1664
    %v1666 = vtanh.pop %v1625
    %v1667 = vxor.u32 %v1645, 2147483648
    %v1668 = vmul.f32 %v1667, 1.442695
    %v1669 = vpow.pop %v1668
    %v1670 = vadd.f32 %v1669, 1.0
    %v1671 = vrcp.pop %v1670
    %v1672 = vmul.f32 %v1670, %v1671
    %v1673 = vsub.f32 1.0, %v1672
    %v1674 = vmul.f32 %v1671, %v1673
    %v1675 = vadd.f32 %v1671, %v1674
    %vm1676 = vweird.f32 %v1670
    %vm1677 = vweird.f32 %v1671
    %vm1678 = vmor %vm1676, %vm1677
    %v1679 = vsel %vm1678, %v1671, %v1675
    %v1680 = vand.u32 2147483647, %v1670
    %vm1681 = vcmp.eq.f32.partialorder %v1680, 8.507059e+37
    %v1682 = vand.u32 %v1670, 2147483648
    %v1683 = vor.u32 1.1754944e-38, %v1682
    %v1684 = vsel %vm1681, %v1683, %v1679
    %v1685 = vmul.f32 1.0, %v1684
    %v1686 = vmul.f32 %v1665, %v1666
    %v1687 = vtanh.pop %v1686
    %v1688 = vmul.f32 %v1685, %v1687
    %v1689 = vld [vmem:[#allocation3] sm:$0xff]
    %v1690 = vld [vmem:[#allocation3 + $0x8] sm:$0xff]
    %v1691 = vld [vmem:[#allocation3 + $0x10] sm:$0xff]
    %v1692 = vld [vmem:[#allocation3 + $0x18] sm:$0xff]
    %v1693 = vld [vmem:[#allocation3 + $0x20] sm:$0xff]
    %v1694 = vld [vmem:[#allocation3 + $0x28] sm:$0xff]
    %v1695 = vld [vmem:[#allocation3 + $0x30] sm:$0xff]
    %v1696 = vld [vmem:[#allocation3 + $0x38] sm:$0xff]
    %v1697 = vld [vmem:[#allocation3 + $0x40] sm:$0xff]
    %v1698 = vld [vmem:[#allocation3 + $0x48] sm:$0xff]
    %v1699 = vld [vmem:[#allocation3 + $0x50] sm:$0xff]
    %v1700 = vld [vmem:[#allocation3 + $0x58] sm:$0xff]
    %v1701 = vld [vmem:[#allocation3 + $0x60] sm:$0xff]
    %v1702 = vld [vmem:[#allocation3 + $0x68] sm:$0xff]
    %v1703 = vld [vmem:[#allocation3 + $0x70] sm:$0xff]
    %v1704 = vld [vmem:[#allocation3 + $0x78] sm:$0xff]
    %v1705 = vld [vmem:[#allocation3 + $0x80] sm:$0xff]
    %v1706 = vld [vmem:[#allocation3 + $0x88] sm:$0xff]
    %v1707 = vld [vmem:[#allocation3 + $0x90] sm:$0xff]
    %v1708 = vld [vmem:[#allocation3 + $0x98] sm:$0xff]
    %v1709 = vld [vmem:[#allocation3 + $0xa0] sm:$0xff]
    %v1710 = vld [vmem:[#allocation3 + $0xa8] sm:$0xff]
    %v1711 = vld [vmem:[#allocation3 + $0xb0] sm:$0xff]
    %v1712 = vld [vmem:[#allocation3 + $0xb8] sm:$0xff]
    %v1713 = vld [vmem:[#allocation3 + $0xc0] sm:$0xff]
    %v1714 = vld [vmem:[#allocation3 + $0xc8] sm:$0xff]
    %v1715 = vld [vmem:[#allocation3 + $0xd0] sm:$0xff]
    %v1716 = vld [vmem:[#allocation3 + $0xd8] sm:$0xff]
    %v1717 = vld [vmem:[#allocation3 + $0xe0] sm:$0xff]
    %v1718 = vld [vmem:[#allocation3 + $0xe8] sm:$0xff]
    %v1719 = vld [vmem:[#allocation3 + $0xf0] sm:$0xff]
    %v1720 = vld [vmem:[#allocation3 + $0xf8] sm:$0xff]
    %v1721 = vld [vmem:[%s13] sm:$0x3]
    %v1723 = vperm.slane %v1721, 0
    %v1724 = vperm.slane %v1721, 1
    %1727 = vmatpush.msra.mxu0 %v1719
    %1728 = vmatpush.msra.mxu0 %v1717
    %1729 = vmatpush.msra.mxu0 %v1715
    %1730 = vmatpush.msra.mxu0 %v1713
    %1731 = vmatpush.msra.mxu0 %v1711
    %1732 = vmatpush.msra.mxu0 %v1709
    %1733 = vmatpush.msra.mxu0 %v1707
    %1734 = vmatpush.msra.mxu0 %v1705
    %1735 = vmatpush.msra.mxu0 %v1703
    %1736 = vmatpush.msra.mxu0 %v1701
    %1737 = vmatpush.msra.mxu0 %v1699
    %1738 = vmatpush.msra.mxu0 %v1697
    %1739 = vmatpush.msra.mxu0 %v1695
    %1740 = vmatpush.msra.mxu0 %v1693
    %1741 = vmatpush.msra.mxu0 %v1691
    %1742 = vmatpush.msra.mxu0 %v1689
    %1743 = vmatmul.f32.gmra.mxu0 %v1688
    %v1744 = vpop.f32.mrf.mxu0
    %v1745 = vadd.f32 %v1723, %v1744
    %1746 = vdwg.mxu0
    %1747 = vmatpush.msra.mxu0 %v1720
    %1748 = vmatpush.msra.mxu0 %v1718
    %1749 = vmatpush.msra.mxu0 %v1716
    %1750 = vmatpush.msra.mxu0 %v1714
    %1751 = vmatpush.msra.mxu0 %v1712
    %1752 = vmatpush.msra.mxu0 %v1710
    %1753 = vmatpush.msra.mxu0 %v1708
    %1754 = vmatpush.msra.mxu0 %v1706
    %1755 = vmatpush.msra.mxu0 %v1704
    %1756 = vmatpush.msra.mxu0 %v1702
    %1757 = vmatpush.msra.mxu0 %v1700
    %1758 = vmatpush.msra.mxu0 %v1698
    %1759 = vmatpush.msra.mxu0 %v1696
    %1760 = vmatpush.msra.mxu0 %v1694
    %1761 = vmatpush.msra.mxu0 %v1692
    %1762 = vmatpush.msra.mxu0 %v1690
    %1763 = vmatmul.f32.gmra.mxu0 %v1688
    %v1764 = vpop.f32.mrf.mxu0
    %v1765 = vadd.f32 %v1724, %v1764
    %1766 = vdwg.mxu0
    %v1767 = vmax.f32 %v1745, 0.0
    %v1768 = vmax.f32 %v1765, 0.0
    %v1769 = vld [vmem:[%s14] sm:$0xff]
    %v1770 = vld [vmem:[%s14 + $0x8] sm:$0xff]
    %v1771 = vld [vmem:[%s14 + $0x10] sm:$0xff]
    %v1772 = vld [vmem:[%s14 + $0x18] sm:$0xff]
    %v1773 = vld [vmem:[%s14 + $0x20] sm:$0xff]
    %v1774 = vld [vmem:[%s14 + $0x28] sm:$0xff]
    %v1775 = vld [vmem:[%s14 + $0x30] sm:$0xff]
    %v1776 = vld [vmem:[%s14 + $0x38] sm:$0xff]
    %v1777 = vld [vmem:[%s14 + $0x40] sm:$0xff]
    %v1778 = vld [vmem:[%s14 + $0x48] sm:$0xff]
    %v1779 = vld [vmem:[%s14 + $0x50] sm:$0xff]
    %v1780 = vld [vmem:[%s14 + $0x58] sm:$0xff]
    %v1781 = vld [vmem:[%s14 + $0x60] sm:$0xff]
    %v1782 = vld [vmem:[%s14 + $0x68] sm:$0xff]
    %v1783 = vld [vmem:[%s14 + $0x70] sm:$0xff]
    %v1784 = vld [vmem:[%s14 + $0x78] sm:$0xff]
    %v1785 = vld [vmem:[%s14 + $0x80] sm:$0xff]
    %v1786 = vld [vmem:[%s14 + $0x88] sm:$0xff]
    %v1787 = vld [vmem:[%s14 + $0x90] sm:$0xff]
    %v1788 = vld [vmem:[%s14 + $0x98] sm:$0xff]
    %v1789 = vld [vmem:[%s14 + $0xa0] sm:$0xff]
    %v1790 = vld [vmem:[%s14 + $0xa8] sm:$0xff]
    %v1791 = vld [vmem:[%s14 + $0xb0] sm:$0xff]
    %v1792 = vld [vmem:[%s14 + $0xb8] sm:$0xff]
    %v1793 = vld [vmem:[%s14 + $0xc0] sm:$0xff]
    %v1794 = vld [vmem:[%s14 + $0xc8] sm:$0xff]
    %v1795 = vld [vmem:[%s14 + $0xd0] sm:$0xff]
    %v1796 = vld [vmem:[%s14 + $0xd8] sm:$0xff]
    %v1797 = vld [vmem:[%s14 + $0xe0] sm:$0xff]
    %v1798 = vld [vmem:[%s14 + $0xe8] sm:$0xff]
    %v1799 = vld [vmem:[%s14 + $0xf0] sm:$0xff]
    %v1800 = vld [vmem:[%s14 + $0xf8] sm:$0xff]
    %v1801 = vld [vmem:[%s15] sm:$0x1]
    %v1803 = vperm.slane %v1801, 0
    %1805 = vmatpush.msra.mxu0 %v1784
    %1806 = vmatpush.msra.mxu0 %v1783
    %1807 = vmatpush.msra.mxu0 %v1782
    %1808 = vmatpush.msra.mxu0 %v1781
    %1809 = vmatpush.msra.mxu0 %v1780
    %1810 = vmatpush.msra.mxu0 %v1779
    %1811 = vmatpush.msra.mxu0 %v1778
    %1812 = vmatpush.msra.mxu0 %v1777
    %1813 = vmatpush.msra.mxu0 %v1776
    %1814 = vmatpush.msra.mxu0 %v1775
    %1815 = vmatpush.msra.mxu0 %v1774
    %1816 = vmatpush.msra.mxu0 %v1773
    %1817 = vmatpush.msra.mxu0 %v1772
    %1818 = vmatpush.msra.mxu0 %v1771
    %1819 = vmatpush.msra.mxu0 %v1770
    %1820 = vmatpush.msra.mxu0 %v1769
    %1821 = vmatmul.f32.gmra.mxu0 %v1767
    %v1822 = vpop.f32.mrf.mxu0
    %v1823 = vadd.f32 %v1803, %v1822
    %1824 = vdwg.mxu0
    %1825 = vmatpush.msra.mxu0 %v1800
    %1826 = vmatpush.msra.mxu0 %v1799
    %1827 = vmatpush.msra.mxu0 %v1798
    %1828 = vmatpush.msra.mxu0 %v1797
    %1829 = vmatpush.msra.mxu0 %v1796
    %1830 = vmatpush.msra.mxu0 %v1795
    %1831 = vmatpush.msra.mxu0 %v1794
    %1832 = vmatpush.msra.mxu0 %v1793
    %1833 = vmatpush.msra.mxu0 %v1792
    %1834 = vmatpush.msra.mxu0 %v1791
    %1835 = vmatpush.msra.mxu0 %v1790
    %1836 = vmatpush.msra.mxu0 %v1789
    %1837 = vmatpush.msra.mxu0 %v1788
    %1838 = vmatpush.msra.mxu0 %v1787
    %1839 = vmatpush.msra.mxu0 %v1786
    %1840 = vmatpush.msra.mxu0 %v1785
    %1841 = vmatmul.f32.gmra.mxu0 %v1768
    %v1842 = vpop.f32.mrf.mxu0
    %v1843 = vadd.f32 %v1823, %v1842
    %1844 = vdwg.mxu0
    %v1845 = vmax.f32 %v1843, 0.0
    %v1846 = vld [vmem:[%s16] sm:$0xff]
    %v1847 = vld [vmem:[%s16 + $0x8] sm:$0xff]
    %v1848 = vld [vmem:[%s16 + $0x10] sm:$0xff]
    %v1849 = vld [vmem:[%s16 + $0x18] sm:$0xff]
    %v1850 = vld [vmem:[#allocation2] sm:$0x1]
    %v1852 = vperm.slane %v1850, 0
    %v1855 = vsel %vm416, %v1845, 0
    %1857 = vmatpush.msra.mxu0 0.0
    %1858 = vmatpush.msra.mxu0 0.0
    %1859 = vmatpush.msra.mxu0 0.0
    %1860 = vmatpush.msra.mxu0 0.0
    %1861 = vmatpush.msra.mxu0 0.0
    %1862 = vmatpush.msra.mxu0 0.0
    %1863 = vmatpush.msra.mxu0 0.0
    %1864 = vmatpush.msra.mxu0 0.0
    %1865 = vmatpush.msra.mxu0 0.0
    %1866 = vmatpush.msra.mxu0 0.0
    %1867 = vmatpush.msra.mxu0 0.0
    %1868 = vmatpush.msra.mxu0 0.0
    %1869 = vmatpush.msra.mxu0 %v1849
    %1870 = vmatpush.msra.mxu0 %v1848
    %1871 = vmatpush.msra.mxu0 %v1847
    %1872 = vmatpush.msra.mxu0 %v1846
    %1873 = vmatmul.f32.gmra.mxu0 %v1855
    %v1874 = vpop.f32.mrf.mxu0
    %v1875 = vadd.f32 %v1852, %v1874
    %1876 = vdwg.mxu0
    %vm1877 = vcmask 1024
    %1878 = vst.msk [vmem:[%s18] sm:$0x3] %vm1877, %v1875
    // Predicated region
    $region78: #{tpu_custom_call.1} parent=1 // pred_check
      _
    $region79: #{tpu_custom_call.1} parent=1 // pred_check_branch
      %1880 = sbr.rel (0) target = $region81
    $region80: #{tpu_custom_call.1} parent=1 // pred_region
      _
    $region81: #{tpu_custom_call.1} parent=1 // pred_fallthru
      _
    // Predicated region
    $region82: #{tpu_custom_call.1} parent=1 // pred_check
      _
    $region83: #{tpu_custom_call.1} parent=1 // pred_check_branch
      %1882 = sbr.rel (0) target = $region85
    $region84: #{tpu_custom_call.1} parent=1 // pred_region
      _
    $region85: #{tpu_custom_call.1} parent=1 // pred_fallthru
      _
    %1883 = vsyncpa [#allocation4], 1

</llo_original>
